<compile_context>
chip_gen: v6e
topology: v6e:2x2x1
jax: 0.10.0
libtpu: 0.0.40
codegen_flags: <defaults>
</compile_context>

<pallas_src>
import functools

import jax
import jax.numpy as jnp
from jax import lax
from jax.experimental import pallas as pl
from jax.experimental.pallas import tpu as pltpu

K_EXPERTS = 4
ATT_REDUCTION = 0.0625
ATT_MIN_CH = 16
TEMPERATURE = 1.0
BN_EPS = 1e-5
LANE = 128
SUBLANE = 8


def _round_up(x, m):
    return ((x + m - 1) // m) * m


def _vmem_limit_bytes():
    """Per-generation VMEM limit: ~3/4 of physical VMEM (96 MiB on v5e/v6e's
    128 MiB, 48 MiB on v7x's 64 MiB); conservative fallback if unavailable."""
    try:
        cap = int(pltpu.get_tpu_info().vmem_capacity_bytes)
    except Exception:
        cap = 0
    if cap <= 0:
        cap = 64 * 1024 * 1024
    return int(min(cap * 3 // 4, 100 * 1024 * 1024))


def _pick_tile_q(q_rows, wp, cin_pad, cout_pad, halo, tile_q, vmem_limit):
    """Flat-row tile length: a multiple of Wp (hence of 8), sized so the halo
    (2*Wp+8 rows) is amortized and the working set fits ~half the VMEM limit."""
    if tile_q is not None:
        tq = min(max(int(tile_q), wp), q_rows)
        return max(wp, (tq // wp) * wp)
    # Per-row VMEM bytes: halo double buffer (4*Cin) + packed 3*Cin window and
    # its matmul operand slices (~12*Cin) + out double buffer (4*Cout) +
    # f32 accumulator (4*Cout) + epilogue temp (4*Cout).
    per_row = 16 * cin_pad + 12 * cout_pad
    fixed = 4 * halo * cin_pad + 4 * 9 * cin_pad * cout_pad
    budget = max(vmem_limit // 2 - fixed, wp * per_row)
    tq = max(wp, (budget // per_row // wp) * wp)
    return min(tq, q_rows)


# ----------------------------- Pallas kernel ---------------------------------
def _make_odconv_kernel(tile_q, halo, wp):
    """Per-sample 3x3 conv over a flattened padded-width spatial axis.

    x_hbm : (B, QROWS, Cin_pad)        bf16, flat zero-padded activation (HBM)
    w_ref : (3, 3*Cin_pad, Cout_pad)   bf16, per-sample dx-folded tap weights
    b_ref : (1, Cout_pad)              f32,  per-channel bias (BN shift)
    o_ref : (tile_q, Cout_pad)         bf16
    xbuf  : (2, tile_q+halo, Cin_pad)  bf16 VMEM halo double buffer
    sem   : DMA semaphores (2,)
    """
    rows = tile_q + halo
    win_rows = tile_q + 2 * wp

    def kernel(x_hbm, w_ref, b_ref, o_ref, xbuf, sem):
        b = pl.program_id(0)
        t = pl.program_id(1)
        n_t = pl.num_programs(1)
        slot = t & 1

        def tile_copy(tile_idx, dst_slot):
            start = pl.multiple_of(tile_idx * tile_q, 8)
            return pltpu.make_async_copy(
                x_hbm.at[b, pl.ds(start, rows)], xbuf.at[dst_slot], sem.at[dst_slot])

        # Prime the double buffer at the first tile of every sample.
        @pl.when(t == 0)
        def _():
            tile_copy(t, slot).start()

        # Wait for the current halo window, then prefetch the next one so the
        # DMA overlaps the matmuls below.
        tile_copy(t, slot).wait()

        @pl.when(t + 1 < n_t)
        def _():
            tile_copy(t + 1, 1 - slot).start()

        xb = xbuf.at[slot]
        # Pack the 3 dx taps into the contraction dim once per tile: only the
        # dx=1 / dx=2 copies are sublane-misaligned (2 shifted copies total
        # instead of 6 misaligned slices).
        win = jnp.concatenate(
            [xb[pl.ds(dx, win_rows), :] for dx in range(3)], axis=-1)

        cout = o_ref.shape[-1]
        acc = jnp.zeros((tile_q, cout), jnp.float32)
        # Three MXU rounds (one per dy) with K = 3*Cin_pad; dy*Wp offsets are
        # sublane-aligned (Wp % 8 == 0).  Single chained accumulator (MRB
        # in-place accumulate on v7x; 3 instead of 9 acc round-trips elsewhere).
        for dy in range(3):
            lhs = win[dy * wp:dy * wp + tile_q, :]        # (tile_q, 3*Cin_pad)
            acc = acc + jnp.dot(lhs, w_ref[dy],
                                preferred_element_type=jnp.float32)

        o_ref[...] = jnp.maximum(acc + b_ref[...], 0.0).astype(o_ref.dtype)

    return kernel


def _pallas_dynamic_conv3x3(x_nhwc, w_eff, bias_eff, *, tile_q=None):
    """3x3 conv, pad=1, per-sample weights, fused bias + ReLU.  Returns bf16."""
    B, H, W, Cin = x_nhwc.shape
    Cout = w_eff.shape[-1]
    cin_pad = _round_up(Cin, LANE)
    cout_pad = _round_up(Cout, LANE)
    Hp = H + 2
    Wp = _round_up(W + 2, SUBLANE)          # sublane-aligned dy*Wp row shifts
    Q = H * Wp                              # useful flat output rows
    HALO = 2 * Wp + SUBLANE                 # halo rows re-read per tile (8-aligned)

    vmem_limit = _vmem_limit_bytes()
    TQ = _pick_tile_q(Q, Wp, cin_pad, cout_pad, HALO, tile_q, vmem_limit)
    n_tiles = pl.cdiv(Q, TQ)
    QPAD = n_tiles * TQ
    QROWS = QPAD + HALO

    # bf16 storage (f32 MXU accumulation); channels zero-padded to lane-dense
    # multiples of 128 so DMAs / MXU operands / output stores are unmasked.
    x_pad = jnp.pad(x_nhwc.astype(jnp.bfloat16),
                    ((0, 0), (1, 1), (1, Wp - W - 1), (0, cin_pad - Cin)))
    x_flat = x_pad.reshape(B, Hp * Wp, cin_pad)
    x_flat = jnp.pad(x_flat, ((0, 0), (0, QROWS - Hp * Wp), (0, 0)))

    # Fold the 3 dx taps into the contraction dim: (B, 3, 3*Cin_pad, Cout_pad).
    w_fold = w_eff.reshape(B, 3, 3, Cin, Cout)
    w_fold = jnp.pad(w_fold, ((0, 0), (0, 0), (0, 0),
                              (0, cin_pad - Cin), (0, cout_pad - Cout)))
    w_fold = w_fold.reshape(B, 3, 3 * cin_pad, cout_pad).astype(jnp.bfloat16)

    bias = jnp.pad(bias_eff.astype(jnp.float32),
                   (0, cout_pad - Cout)).reshape(1, cout_pad)

    flops = 2 * B * QPAD * 9 * cin_pad * cout_pad
    bytes_accessed = (B * n_tiles * (TQ + HALO) * cin_pad * 2   # incl. halo re-reads
                      + w_fold.size * 2 + bias.size * 4
                      + B * QPAD * cout_pad * 2)

    y = pl.pallas_call(
        _make_odconv_kernel(TQ, HALO, Wp),
        out_shape=jax.ShapeDtypeStruct((B, QPAD, cout_pad), jnp.bfloat16),
        grid_spec=pltpu.PrefetchScalarGridSpec(
            num_scalar_prefetch=0,
            grid=(B, n_tiles),
            in_specs=[
                pl.BlockSpec(memory_space=pl.ANY),                    # x_flat (HBM)
                pl.BlockSpec((pl.Squeezed(), 3, 3 * cin_pad, cout_pad),
                             lambda b, t: (b, 0, 0, 0)),              # per-sample W
                pl.BlockSpec((1, cout_pad), lambda b, t: (0, 0)),     # shared bias
            ],
            out_specs=pl.BlockSpec((pl.Squeezed(), TQ, cout_pad),
                                   lambda b, t: (b, t, 0)),
            scratch_shapes=[
                pltpu.VMEM((2, TQ + HALO, cin_pad), jnp.bfloat16),    # halo dbl buf
                pltpu.SemaphoreType.DMA((2,)),
            ]),
        compiler_params=pltpu.CompilerParams(
            # batch axis -> megacore; q-tile axis is 'arbitrary' because the
            # manual halo-DMA double buffer carries state across it.
            dimension_semantics=("parallel", "arbitrary"),
            vmem_limit_bytes=vmem_limit),
        cost_estimate=pl.CostEstimate(flops=flops, transcendentals=0,
                                      bytes_accessed=bytes_accessed),
    )(x_flat, w_fold, bias)

    # Drop padded tail rows, padded-width garbage columns and padded channels.
    return y[:, :Q, :].reshape(B, H, Wp, cout_pad)[:, :, :W, :Cout]


# ------------------------------ JAX glue --------------------------------------
def _odconv_effective_weights(x_nhwc, p):
    """ODConv attentions + expert aggregation, with channel/filter attention and
    eval-mode BatchNorm folded into per-sample weights.

    Returns w_eff (B, 9, Cin, Cout) f32 and bias_eff (Cout,) f32."""
    K, Cout, Cin, _, _ = p["weight"].shape

    x32 = x_nhwc.astype(jnp.float32)
    pooled = jnp.mean(x32, axis=(1, 2))                                    # (B, Cin)
    h = pooled @ p["att_fc_w"]                                             # (B, A)
    att_scale = p["att_bn_gamma"] * lax.rsqrt(p["att_bn_var"] + BN_EPS)
    h = jnp.maximum((h - p["att_bn_mean"]) * att_scale + p["att_bn_beta"], 0.0)

    temp = TEMPERATURE
    chan_att = jax.nn.sigmoid((h @ p["chan_w"] + p["chan_b"]) / temp)      # (B, Cin)
    filt_att = jax.nn.sigmoid((h @ p["filt_w"] + p["filt_b"]) / temp)      # (B, Cout)
    spat_att = jax.nn.sigmoid((h @ p["spat_w"] + p["spat_b"]) / temp)      # (B, 9)
    kern_att = jax.nn.softmax((h @ p["kern_w"] + p["kern_b"]) / temp, -1)  # (B, K)

    w = p["weight"].reshape(K, Cout, Cin, 9)
    # sum_k kernel_att * spatial_att * expert weights -> (B, 9, Cin, Cout)
    agg = jnp.einsum("bk,bs,kocs->bsco", kern_att, spat_att, w)

    bn_scale = p["bn_gamma"] * lax.rsqrt(p["bn_var"] + BN_EPS)             # (Cout,)
    w_eff = agg * chan_att[:, None, :, None] * (filt_att * bn_scale)[:, None, None, :]
    bias_eff = p["bn_beta"] - p["bn_mean"] * bn_scale                      # (Cout,)
    return w_eff, bias_eff


def odconv_bn_relu(x_nhwc, p, *, use_pallas=True, tile_q=None):
    """ODConv2d(k=3, pad=1, stride=1, groups=1) + BatchNorm2d(eval) + ReLU."""
    B, H, W, Cin = x_nhwc.shape
    Cout = p["weight"].shape[1]
    w_eff, bias_eff = _odconv_effective_weights(x_nhwc, p)

    if use_pallas:
        return _pallas_dynamic_conv3x3(x_nhwc, w_eff, bias_eff, tile_q=tile_q)

    # pure-JAX f32 reference (im2col einsum)
    x32 = x_nhwc.astype(jnp.float32)
    x_pad = jnp.pad(x32, ((0, 0), (1, 1), (1, 1), (0, 0)))
    cols = [x_pad[:, dy:dy + H, dx:dx + W, :] for dy in range(3) for dx in range(3)]
    patches = jnp.stack(cols, axis=3).reshape(B, H * W, 9 * Cin)
    w_mat = w_eff.reshape(B, 9 * Cin, Cout)
    y = jnp.einsum("bpk,bkc->bpc", patches, w_mat) + bias_eff[None, None, :]
    return jnp.maximum(y, 0.0).reshape(B, H, W, Cout)


def conv_block_odconv_forward(x_nchw, params1, params2, *, use_pallas=True, tile_q=None):
    x = jnp.transpose(x_nchw, (0, 2, 3, 1))            # NCHW -> NHWC
    x = odconv_bn_relu(x, params1, use_pallas=use_pallas, tile_q=tile_q)
    x = odconv_bn_relu(x, params2, use_pallas=use_pallas, tile_q=tile_q)
    return jnp.transpose(x, (0, 3, 1, 2)).astype(jnp.float32)   # NHWC -> NCHW


# --------------------------- deterministic params -----------------------------
def init_odconv_params(key, cin, cout):
    hidden = max(int(cin * ATT_REDUCTION), ATT_MIN_CH)
    ks = jax.random.split(key, 12)
    return {
        "att_fc_w": 0.5 * jax.random.normal(ks[0], (cin, hidden), jnp.float32),
        "att_bn_gamma": 1.0 + 0.1 * jax.random.normal(ks[1], (hidden,), jnp.float32),
        "att_bn_beta": 0.1 * jax.random.normal(ks[2], (hidden,), jnp.float32),
        "att_bn_mean": 0.05 * jax.random.normal(ks[3], (hidden,), jnp.float32),
        "att_bn_var": jnp.ones((hidden,), jnp.float32),
        "chan_w": 0.3 * jax.random.normal(ks[4], (hidden, cin), jnp.float32),
        "chan_b": jnp.zeros((cin,), jnp.float32),
        "filt_w": 0.3 * jax.random.normal(ks[5], (hidden, cout), jnp.float32),
        "filt_b": jnp.zeros((cout,), jnp.float32),
        "spat_w": 0.3 * jax.random.normal(ks[6], (hidden, 9), jnp.float32),
        "spat_b": jnp.zeros((9,), jnp.float32),
        "kern_w": 0.3 * jax.random.normal(ks[7], (hidden, K_EXPERTS), jnp.float32),
        "kern_b": jnp.zeros((K_EXPERTS,), jnp.float32),
        "weight": 0.2 * jax.random.normal(ks[8], (K_EXPERTS, cout, cin, 3, 3), jnp.float32),
        "bn_gamma": 1.0 + 0.1 * jax.random.normal(ks[9], (cout,), jnp.float32),
        "bn_beta": 0.1 * jax.random.normal(ks[10], (cout,), jnp.float32),
        "bn_mean": 0.05 * jax.random.normal(ks[11], (cout,), jnp.float32),
        "bn_var": jnp.ones((cout,), jnp.float32),
    }


# ---------------------------------- main --------------------------------------
if __name__ == "__main__":
    key = jax.random.PRNGKey(0)
    k_x, k_p1, k_p2 = jax.random.split(key, 3)

    B, CH_IN, CH_OUT, H, W = 2, 4, 8, 16, 16
    x_nchw = jax.random.normal(k_x, (B, CH_IN, H, W), jnp.float32)

    params1 = init_odconv_params(k_p1, CH_IN, CH_OUT)
    params2 = init_odconv_params(k_p2, CH_OUT, CH_OUT)

    # tile_q=96 (= 4*Wp) splits the toy 16x16 image into 4 flat-row tiles so the
    # halo DMA double-buffering / prefetch path is exercised at this small size;
    # the default (tile_q=None) auto-sizes TQ from the per-generation VMEM budget.
    fwd_pallas = jax.jit(functools.partial(conv_block_odconv_forward,
                                           params1=params1, params2=params2,
                                           use_pallas=True, tile_q=96))
    fwd_ref = jax.jit(functools.partial(conv_block_odconv_forward,
                                        params1=params1, params2=params2,
                                        use_pallas=False))

    out = jax.block_until_ready(fwd_pallas(x_nchw))
    ref = jax.block_until_ready(fwd_ref(x_nchw))

    assert out.shape == (B, CH_OUT, H, W), out.shape
    assert bool(jnp.all(jnp.isfinite(out)))
    max_err = float(jnp.max(jnp.abs(out - ref)))
    assert bool(jnp.allclose(out, ref, rtol=2e-2, atol=2e-2)), max_err

    print("KERNEL_OK")
</pallas_src>

<mosaic_0001>
module attributes {stable_mosaic.version = 11 : i64} {
  func.func @kernel(%arg0: i32, %arg1: i32, %arg2: memref<2x440x128xbf16, #tpu.memory_space<any>>, %arg3: memref<1x3x384x128xbf16, #tpu.memory_space<vmem>>, %arg4: memref<1x128xf32, #tpu.memory_space<vmem>>, %arg5: memref<1x96x128xbf16, #tpu.memory_space<vmem>>, %arg6: memref<2x152x128xbf16, #tpu.memory_space<vmem>>, %arg7: memref<2x!tpu.dma_semaphore, #tpu.memory_space<semaphore_mem>>) attributes {dimension_semantics = [#tpu.dimension_semantics<parallel>, #tpu.dimension_semantics<arbitrary>], iteration_bounds = array<i64: 2, 4>, scalar_prefetch = 0 : i64, scratch_operands = 2 : i64, tpu.core_type = #tpu.core_type<tc>, window_params = [{}, {transform_indices = @transform_1, window_bounds = array<i64: 1, 3, 384, 128>}, {pipeline_mode = #tpu.pipeline_mode<synchronous>, transform_indices = @transform_2, window_bounds = array<i64: 1, 128>}, {transform_indices = @transform_3, window_bounds = array<i64: 1, 96, 128>}]} {
    %c1_i32 = arith.constant 1 : i32
    %0 = arith.andi %arg1, %c1_i32 : i32
    %c0_i32 = arith.constant 0 : i32
    %1 = arith.cmpi eq, %arg1, %c0_i32 : i32
    %2 = arith.extui %1 : i1 to i32
    %c0_i32_0 = arith.constant 0 : i32
    %3 = arith.cmpi ne, %2, %c0_i32_0 : i32
    scf.if %3 {
      %c96_i32_36 = arith.constant 96 : i32
      %51 = arith.muli %arg1, %c96_i32_36 : i32
      %52 = tpu.assume_multiple %51, 8 : i32
      %c0_i32_37 = arith.constant 0 : i32
      %53 = tpu.memref_slice %arg2[%arg0, %52, %c0_i32_37] : memref<2x440x128xbf16, #tpu.memory_space<any>> -> memref<1x152x128xbf16, #tpu.memory_space<any>>
      %54 = tpu.memref_squeeze %53 : memref<1x152x128xbf16, #tpu.memory_space<any>> -> memref<152x128xbf16, #tpu.memory_space<any>>
      %c0_i32_38 = arith.constant 0 : i32
      %c0_i32_39 = arith.constant 0 : i32
      %55 = tpu.memref_slice %arg6[%0, %c0_i32_38, %c0_i32_39] : memref<2x152x128xbf16, #tpu.memory_space<vmem>> -> memref<1x152x128xbf16, #tpu.memory_space<vmem>>
      %56 = tpu.memref_squeeze %55 : memref<1x152x128xbf16, #tpu.memory_space<vmem>> -> memref<152x128xbf16, #tpu.memory_space<vmem>>
      %57 = tpu.memref_slice %arg7[%0] : memref<2x!tpu.dma_semaphore, #tpu.memory_space<semaphore_mem>> -> memref<1x!tpu.dma_semaphore, #tpu.memory_space<semaphore_mem>>
      %58 = tpu.memref_squeeze %57 : memref<1x!tpu.dma_semaphore, #tpu.memory_space<semaphore_mem>> -> memref<!tpu.dma_semaphore, #tpu.memory_space<semaphore_mem>>
      tpu.enqueue_dma source(%54 : memref<152x128xbf16, #tpu.memory_space<any>>) target(%56 : memref<152x128xbf16, #tpu.memory_space<vmem>>) target_semaphore(%58 : memref<!tpu.dma_semaphore, #tpu.memory_space<semaphore_mem>>)
    } else {
    }
    %c96_i32 = arith.constant 96 : i32
    %4 = arith.muli %arg1, %c96_i32 : i32
    %5 = tpu.assume_multiple %4, 8 : i32
    %c0_i32_1 = arith.constant 0 : i32
    %6 = tpu.memref_slice %arg2[%arg0, %5, %c0_i32_1] : memref<2x440x128xbf16, #tpu.memory_space<any>> -> memref<1x152x128xbf16, #tpu.memory_space<any>>
    %7 = tpu.memref_squeeze %6 : memref<1x152x128xbf16, #tpu.memory_space<any>> -> memref<152x128xbf16, #tpu.memory_space<any>>
    %c0_i32_2 = arith.constant 0 : i32
    %c0_i32_3 = arith.constant 0 : i32
    %8 = tpu.memref_slice %arg6[%0, %c0_i32_2, %c0_i32_3] : memref<2x152x128xbf16, #tpu.memory_space<vmem>> -> memref<1x152x128xbf16, #tpu.memory_space<vmem>>
    %9 = tpu.memref_squeeze %8 : memref<1x152x128xbf16, #tpu.memory_space<vmem>> -> memref<152x128xbf16, #tpu.memory_space<vmem>>
    %10 = tpu.memref_slice %arg7[%0] : memref<2x!tpu.dma_semaphore, #tpu.memory_space<semaphore_mem>> -> memref<1x!tpu.dma_semaphore, #tpu.memory_space<semaphore_mem>>
    %11 = tpu.memref_squeeze %10 : memref<1x!tpu.dma_semaphore, #tpu.memory_space<semaphore_mem>> -> memref<!tpu.dma_semaphore, #tpu.memory_space<semaphore_mem>>
    tpu.wait_dma2 semaphore(%11 : memref<!tpu.dma_semaphore, #tpu.memory_space<semaphore_mem>>) src(%7 : memref<152x128xbf16, #tpu.memory_space<any>>) dst(%9 : memref<152x128xbf16, #tpu.memory_space<vmem>>)
    %c1_i32_4 = arith.constant 1 : i32
    %12 = arith.addi %arg1, %c1_i32_4 : i32
    %c4_i32 = arith.constant 4 : i32
    %13 = arith.cmpi slt, %12, %c4_i32 : i32
    %14 = arith.extui %13 : i1 to i32
    %c0_i32_5 = arith.constant 0 : i32
    %15 = arith.cmpi ne, %14, %c0_i32_5 : i32
    scf.if %15 {
      %c1_i32_36 = arith.constant 1 : i32
      %51 = arith.addi %arg1, %c1_i32_36 : i32
      %c1_i32_37 = arith.constant 1 : i32
      %52 = arith.subi %c1_i32_37, %0 : i32
      %c96_i32_38 = arith.constant 96 : i32
      %53 = arith.muli %51, %c96_i32_38 : i32
      %54 = tpu.assume_multiple %53, 8 : i32
      %c0_i32_39 = arith.constant 0 : i32
      %55 = tpu.memref_slice %arg2[%arg0, %54, %c0_i32_39] : memref<2x440x128xbf16, #tpu.memory_space<any>> -> memref<1x152x128xbf16, #tpu.memory_space<any>>
      %56 = tpu.memref_squeeze %55 : memref<1x152x128xbf16, #tpu.memory_space<any>> -> memref<152x128xbf16, #tpu.memory_space<any>>
      %c0_i32_40 = arith.constant 0 : i32
      %c0_i32_41 = arith.constant 0 : i32
      %57 = tpu.memref_slice %arg6[%52, %c0_i32_40, %c0_i32_41] : memref<2x152x128xbf16, #tpu.memory_space<vmem>> -> memref<1x152x128xbf16, #tpu.memory_space<vmem>>
      %58 = tpu.memref_squeeze %57 : memref<1x152x128xbf16, #tpu.memory_space<vmem>> -> memref<152x128xbf16, #tpu.memory_space<vmem>>
      %59 = tpu.memref_slice %arg7[%52] : memref<2x!tpu.dma_semaphore, #tpu.memory_space<semaphore_mem>> -> memref<1x!tpu.dma_semaphore, #tpu.memory_space<semaphore_mem>>
      %60 = tpu.memref_squeeze %59 : memref<1x!tpu.dma_semaphore, #tpu.memory_space<semaphore_mem>> -> memref<!tpu.dma_semaphore, #tpu.memory_space<semaphore_mem>>
      tpu.enqueue_dma source(%56 : memref<152x128xbf16, #tpu.memory_space<any>>) target(%58 : memref<152x128xbf16, #tpu.memory_space<vmem>>) target_semaphore(%60 : memref<!tpu.dma_semaphore, #tpu.memory_space<semaphore_mem>>)
    } else {
    }
    %c0_i32_6 = arith.constant 0 : i32
    %c0_i32_7 = arith.constant 0 : i32
    %16 = tpu.memref_slice %arg6[%0, %c0_i32_6, %c0_i32_7] : memref<2x152x128xbf16, #tpu.memory_space<vmem>> -> memref<1x152x128xbf16, #tpu.memory_space<vmem>>
    %17 = tpu.memref_squeeze %16 : memref<1x152x128xbf16, #tpu.memory_space<vmem>> -> memref<152x128xbf16, #tpu.memory_space<vmem>>
    %c0 = arith.constant 0 : index
    %c0_8 = arith.constant 0 : index
    %18 = vector.load %17[%c0, %c0_8] : memref<152x128xbf16, #tpu.memory_space<vmem>>, vector<144x128xbf16>
    %c0_i32_9 = arith.constant 0 : i32
    %c0_i32_10 = arith.constant 0 : i32
    %19 = tpu.memref_slice %arg6[%0, %c0_i32_9, %c0_i32_10] : memref<2x152x128xbf16, #tpu.memory_space<vmem>> -> memref<1x152x128xbf16, #tpu.memory_space<vmem>>
    %20 = tpu.memref_squeeze %19 : memref<1x152x128xbf16, #tpu.memory_space<vmem>> -> memref<152x128xbf16, #tpu.memory_space<vmem>>
    %c1 = arith.constant 1 : index
    %c0_11 = arith.constant 0 : index
    %21 = vector.load %20[%c1, %c0_11] : memref<152x128xbf16, #tpu.memory_space<vmem>>, vector<144x128xbf16>
    %c0_i32_12 = arith.constant 0 : i32
    %c0_i32_13 = arith.constant 0 : i32
    %22 = tpu.memref_slice %arg6[%0, %c0_i32_12, %c0_i32_13] : memref<2x152x128xbf16, #tpu.memory_space<vmem>> -> memref<1x152x128xbf16, #tpu.memory_space<vmem>>
    %23 = tpu.memref_squeeze %22 : memref<1x152x128xbf16, #tpu.memory_space<vmem>> -> memref<152x128xbf16, #tpu.memory_space<vmem>>
    %c2 = arith.constant 2 : index
    %c0_14 = arith.constant 0 : index
    %24 = vector.load %23[%c2, %c0_14] : memref<152x128xbf16, #tpu.memory_space<vmem>>, vector<144x128xbf16>
    %25 = tpu.concatenate %18, %21, %24 in 1 : vector<144x128xbf16>, vector<144x128xbf16>, vector<144x128xbf16> -> vector<144x384xbf16>
    %cst = arith.constant 0.000000e+00 : f32
    %26 = vector.broadcast %cst : f32 to vector<96x128xf32>
    %27 = vector.extract_strided_slice %25 {offsets = [0, 0], sizes = [96, 384], strides = [1, 1]} : vector<144x384xbf16> to vector<96x384xbf16>
    %c0_15 = arith.constant 0 : index
    %c0_16 = arith.constant 0 : index
    %c0_17 = arith.constant 0 : index
    %c0_18 = arith.constant 0 : index
    %28 = vector.load %arg3[%c0_15, %c0_16, %c0_17, %c0_18] : memref<1x3x384x128xbf16, #tpu.memory_space<vmem>>, vector<1x1x384x128xbf16>
    %29 = vector.shape_cast %28 : vector<1x1x384x128xbf16> to vector<384x128xbf16>
    %cst_19 = arith.constant dense<0.000000e+00> : vector<96x128xf32>
    %30 = tpu.matmul %27, %29, %cst_19 {dimension_numbers = #tpu.dot_dimension_numbers<[1], [0], [0], [1], [0, 0, 1, 1], [], []>} : vector<96x384xbf16>, vector<384x128xbf16>, vector<96x128xf32> -> vector<96x128xf32>
    %31 = arith.addf %26, %30 : vector<96x128xf32>
    %32 = vector.extract_strided_slice %25 {offsets = [24, 0], sizes = [96, 384], strides = [1, 1]} : vector<144x384xbf16> to vector<96x384xbf16>
    %c0_20 = arith.constant 0 : index
    %c1_21 = arith.constant 1 : index
    %c0_22 = arith.constant 0 : index
    %c0_23 = arith.constant 0 : index
    %33 = vector.load %arg3[%c0_20, %c1_21, %c0_22, %c0_23] : memref<1x3x384x128xbf16, #tpu.memory_space<vmem>>, vector<1x1x384x128xbf16>
    %34 = vector.shape_cast %33 : vector<1x1x384x128xbf16> to vector<384x128xbf16>
    %cst_24 = arith.constant dense<0.000000e+00> : vector<96x128xf32>
    %35 = tpu.matmul %32, %34, %cst_24 {dimension_numbers = #tpu.dot_dimension_numbers<[1], [0], [0], [1], [0, 0, 1, 1], [], []>} : vector<96x384xbf16>, vector<384x128xbf16>, vector<96x128xf32> -> vector<96x128xf32>
    %36 = arith.addf %31, %35 : vector<96x128xf32>
    %37 = vector.extract_strided_slice %25 {offsets = [48, 0], sizes = [96, 384], strides = [1, 1]} : vector<144x384xbf16> to vector<96x384xbf16>
    %c0_25 = arith.constant 0 : index
    %c2_26 = arith.constant 2 : index
    %c0_27 = arith.constant 0 : index
    %c0_28 = arith.constant 0 : index
    %38 = vector.load %arg3[%c0_25, %c2_26, %c0_27, %c0_28] : memref<1x3x384x128xbf16, #tpu.memory_space<vmem>>, vector<1x1x384x128xbf16>
    %39 = vector.shape_cast %38 : vector<1x1x384x128xbf16> to vector<384x128xbf16>
    %cst_29 = arith.constant dense<0.000000e+00> : vector<96x128xf32>
    %40 = tpu.matmul %37, %39, %cst_29 {dimension_numbers = #tpu.dot_dimension_numbers<[1], [0], [0], [1], [0, 0, 1, 1], [], []>} : vector<96x384xbf16>, vector<384x128xbf16>, vector<96x128xf32> -> vector<96x128xf32>
    %41 = arith.addf %36, %40 : vector<96x128xf32>
    %c0_30 = arith.constant 0 : index
    %c0_31 = arith.constant 0 : index
    %42 = vector.load %arg4[%c0_30, %c0_31] : memref<1x128xf32, #tpu.memory_space<vmem>>, vector<1x128xf32>
    %43 = vector.broadcast %42 : vector<1x128xf32> to vector<96x128xf32>
    %44 = arith.addf %41, %43 : vector<96x128xf32>
    %cst_32 = arith.constant 0.000000e+00 : f32
    %45 = vector.broadcast %cst_32 : f32 to vector<96x128xf32>
    %46 = arith.maximumf %44, %45 : vector<96x128xf32>
    %47 = arith.truncf %46 : vector<96x128xf32> to vector<96x128xbf16>
    %c0_33 = arith.constant 0 : index
    %c0_34 = arith.constant 0 : index
    %c0_35 = arith.constant 0 : index
    %48 = vector.load %arg5[%c0_33, %c0_34, %c0_35] : memref<1x96x128xbf16, #tpu.memory_space<vmem>>, vector<1x96x128xbf16>
    %49 = vector.shape_cast %48 : vector<1x96x128xbf16> to vector<96x128xbf16>
    %50 = vector.shape_cast %47 : vector<96x128xbf16> to vector<1x96x128xbf16>
    tpu.vector_store %arg5[%c0_33, %c0_34, %c0_35], %50 {strides = array<i32>} : memref<1x96x128xbf16, #tpu.memory_space<vmem>>, vector<1x96x128xbf16>,
    return
  }
  func.func @transform_1(%arg0: i32, %arg1: i32) -> (i32, i32, i32, i32) {
    %c0_i32 = arith.constant 0 : i32
    %c0_i32_0 = arith.constant 0 : i32
    %c0_i32_1 = arith.constant 0 : i32
    %c0_i32_2 = arith.constant 0 : i32
    return %arg0, %c0_i32, %c0_i32_0, %c0_i32_1 : i32, i32, i32, i32
  }
  func.func @transform_2(%arg0: i32, %arg1: i32) -> (i32, i32) {
    %c0_i32 = arith.constant 0 : i32
    %c0_i32_0 = arith.constant 0 : i32
    %c0_i32_1 = arith.constant 0 : i32
    return %c0_i32, %c0_i32_0 : i32, i32
  }
  func.func @transform_3(%arg0: i32, %arg1: i32) -> (i32, i32, i32) {
    %c0_i32 = arith.constant 0 : i32
    %c0_i32_0 = arith.constant 0 : i32
    return %arg0, %arg1, %c0_i32 : i32, i32, i32
  }
}

</mosaic_0001>

<llo_original>
// kernel: conv_block_odconv_forward.2
$region0: #{conv_block_odconv_forward.2}
  #allocation0 [shape = 'u32[]', space=smem, size = 0x4, offset = 0x4, fixed_abs, tag = 'smem constant byte address 0x4 - core index']
  #allocation1 [shape = 'u32[144,128]{1,0:T(1,128)}', space=vmem, size = 0x12000, scoped, tag = 'internal scratch']
  #allocation2 [shape = 'bf16[2,152,128]{2,1,0:T(8,128)(2,1)}', space=vmem, size = 0x13000, scoped, tag = 'scratch operand']
  #allocation3 [shape = 's32[2]{0}', space=sflag, size = 0x8, scoped, tag = 'scratch operand']
  #allocation4 [shape = 's32[]', space=sflag, size = 0x4, offset = 0, fixed_abs, tag = 'sflag constant byte address 0x0 - dummy sync flag']
  #allocation5 [shape = 's32[]', space=sflag, size = 0x4, offset = 0, fixed_abs, tag = 'sflag constant byte address 0x0 - dummy sync flag']
  %s0 = inlined_call_operand.vmem [shape: bf16[2,440,128], index: 0, kind: input, shape index: {}]
  %s1 = inlined_call_operand.vmem [shape: bf16[2,3,384,128], index: 1, kind: input, shape index: {}]
  %s2 = inlined_call_operand.vmem [shape: f32[1,128], index: 2, kind: input, shape index: {}]
  %s3 = inlined_call_operand.vmem [shape: bf16[2,384,128], index: 3, kind: output, shape index: {}]
  %s4 = sld [smem:[#allocation0]]
  $region123: #{conv_block_odconv_forward.2} parent=0
    _
  %s6 = ssub.s32 1, %s4
  %s7 = scalar_select 0, %s6, %s4
  loop: start=0, step=1, limit=10
  $region2: #{conv_block_odconv_forward.2} parent=0 // loop_pre_header
    _
  $region3: #{conv_block_odconv_forward.2} parent=0 // loop_header
    %s9 = sphi 0, %s13
    %p10 = scmp.ge.s32.totalorder %s9, 10
    %s16 = sphi 0, %s28
    %s17 = sphi 0, %s24
    %s18 = sphi 0, %s16
    %s19 = sphi 0, %s17
    %s20 = sphi 0, %s18
    %s21 = sphi 0, %s19
    %s31 = sphi 0, %s33
    %s34 = sphi 0, %s31
    %s35 = sphi 0, %s34
    %s51 = sphi 0, %s35
    %s55 = sphi 0, %s55
    %s57 = sphi 0, %s55
    %s58 = sphi 0, %s57
    %s72 = sphi 0, %s58
    %s80 = sphi 0, %s82
    %s83 = sphi 0, %s80
    %s84 = sphi 0, %s83
    %s100 = sphi 0, %s84
  $region4: #{conv_block_odconv_forward.2} parent=0 // loop_header_branch
    %12 = sbr.rel (%p10) target = $region8
  $region5: #{conv_block_odconv_forward.2} parent=0 // loop_body
    %s14 = ssub.s32 %s9, 1
    %s15 = ssub.s32 %s9, 2
    %s22 = sadd.s32 1, %s17
    %p23 = scmp.ge.s32.totalorder %s22, 4
    %s24 = scalar_select %p23, 0, %s22
    %s25 = sadd.s32 1, %s16
    %s26 = scalar_select %p23, %s25, %s16
    %p27 = scmp.ge.s32.totalorder %s26, 2
    %s28 = scalar_select %p27, 0, %s26
    %s29 = ssub.s32 %s16, %s28
    %p30 = scmp.eq.s32.totalorder %s29, 0
    %s32 = sadd.s32 %s31, 1
    %s33 = scalar_select %p30, %s31, %s32
    %p36 = pneg %p30
    %p37 = scmp.eq.s32.totalorder %s9, 7
    %p38 = por %p36, %p37
    %p39 = scmp.ne.s32.totalorder %s31, %s34
    %p40 = scmp.eq.s32.totalorder %s9, 0
    %p41 = por %p39, %p40
    %p42 = scmp.ne.s32.totalorder %s31, %s34
    %p43 = scmp.eq.s32.totalorder %s14, 7
    %p44 = por %p42, %p43
    %p45 = scmp.ne.s32.totalorder %s34, %s35
    %p46 = scmp.eq.s32.totalorder %s14, 0
    %p47 = por %p45, %p46
    %p48 = scmp.ne.s32.totalorder %s34, %s35
    %p49 = scmp.eq.s32.totalorder %s15, 7
    %p50 = por %p48, %p49
    %p52 = scmp.ne.s32.totalorder %s35, %s51
    %p53 = scmp.eq.s32.totalorder %s15, 0
    %p54 = por %p52, %p53
    %s56 = sadd.s32 %s55, 1
    %p59 = scmp.eq.s32.totalorder %s9, 7
    %p60 = scmp.ne.s32.totalorder %s55, %s57
    %p61 = scmp.eq.s32.totalorder %s9, 0
    %p62 = por %p60, %p61
    %p63 = scmp.ne.s32.totalorder %s55, %s57
    %p64 = scmp.eq.s32.totalorder %s14, 7
    %p65 = por %p63, %p64
    %p66 = scmp.ne.s32.totalorder %s57, %s58
    %p67 = scmp.eq.s32.totalorder %s14, 0
    %p68 = por %p66, %p67
    %p69 = scmp.ne.s32.totalorder %s57, %s58
    %p70 = scmp.eq.s32.totalorder %s15, 7
    %p71 = por %p69, %p70
    %p73 = scmp.ne.s32.totalorder %s58, %s72
    %p74 = scmp.eq.s32.totalorder %s15, 0
    %p75 = por %p73, %p74
    %s76 = ssub.s32 %s16, %s28
    %s77 = ssub.s32 %s17, %s24
    %s78 = sor.u32 %s76, %s77
    %p79 = scmp.eq.s32.totalorder %s78, 0
    %s81 = sadd.s32 %s80, 1
    %s82 = scalar_select %p79, %s80, %s81
    %p85 = pneg %p79
    %p86 = scmp.eq.s32.totalorder %s9, 7
    %p87 = por %p85, %p86
    %p88 = scmp.ne.s32.totalorder %s80, %s83
    %p89 = scmp.eq.s32.totalorder %s9, 0
    %p90 = por %p88, %p89
    %p91 = scmp.ne.s32.totalorder %s80, %s83
    %p92 = scmp.eq.s32.totalorder %s14, 7
    %p93 = por %p91, %p92
    %p94 = scmp.ne.s32.totalorder %s83, %s84
    %p95 = scmp.eq.s32.totalorder %s14, 0
    %p96 = por %p94, %p95
    %p97 = scmp.ne.s32.totalorder %s83, %s84
    %p98 = scmp.eq.s32.totalorder %s15, 7
    %p99 = por %p97, %p98
    %p101 = scmp.ne.s32.totalorder %s84, %s100
    %p102 = scmp.eq.s32.totalorder %s15, 0
    %p103 = por %p101, %p102
    %p104 = scmp.le.s32.totalorder 1, %s9
    %p105 = scmp.lt.s32.totalorder %s9, 9
    %p106 = pnand %p104, %p105
    %p107 = pneg %p106
    // Predicated region
    $region9: #{conv_block_odconv_forward.2} parent=5 // pred_check
      _
    $region10: #{conv_block_odconv_forward.2} parent=5 // pred_check_branch
      %109 = sbr.rel (%p106) target = $region12
    $region11: #{conv_block_odconv_forward.2} parent=5 // pred_region
      %s110 = ssub.s32 %s9, 1
      // Predicated region
      $region13: #{conv_block_odconv_forward.2} parent=11 // pred_check
        %p111 = pneg %p68
      $region14: #{conv_block_odconv_forward.2} parent=11 // pred_check_branch
        %113 = sbr.rel (%p111) target = $region16
      $region15: #{conv_block_odconv_forward.2} parent=11 // pred_region
        _
      $region16: #{conv_block_odconv_forward.2} parent=11 // pred_fallthru
        _
    $region12: #{conv_block_odconv_forward.2} parent=5 // pred_fallthru
      _
    %p114 = scmp.lt.s32.totalorder %s9, 8
    // Predicated region
    $region17: #{conv_block_odconv_forward.2} parent=5 // pred_check
      %p115 = pneg %p114
    $region18: #{conv_block_odconv_forward.2} parent=5 // pred_check_branch
      %117 = sbr.rel (%p115) target = $region20
    $region19: #{conv_block_odconv_forward.2} parent=5 // pred_region
      // Predicated region
      $region21: #{conv_block_odconv_forward.2} parent=19 // pred_check
        %p118 = pneg %p41
      $region22: #{conv_block_odconv_forward.2} parent=19 // pred_check_branch
        %120 = sbr.rel (%p118) target = $region24
      $region23: #{conv_block_odconv_forward.2} parent=19 // pred_region
        %p121 = scmp.lt.s32.totalorder %s16, 1
        %s122 = scalar_select %p121, %s16, 1
        %s123 = smul.addr %s122, 144
        %s124 = smul.addr %s123, 4
        %s125 = scalar_lea.vmem %s1, %s124
      $region24: #{conv_block_odconv_forward.2} parent=19 // pred_fallthru
        _
    $region20: #{conv_block_odconv_forward.2} parent=5 // pred_fallthru
      _
    %p126 = scmp.le.s32.totalorder 1, %s9
    %p127 = scmp.lt.s32.totalorder %s9, 9
    %p128 = pnand %p126, %p127
    %p129 = pneg %p128
    // Predicated region
    $region25: #{conv_block_odconv_forward.2} parent=5 // pred_check
      _
    $region26: #{conv_block_odconv_forward.2} parent=5 // pred_check_branch
      %131 = sbr.rel (%p128) target = $region28
    $region27: #{conv_block_odconv_forward.2} parent=5 // pred_region
      %s132 = ssub.s32 %s9, 1
      %p133 = scmp.lt.s32.totalorder %s18, 1
      %s134 = scalar_select %p133, %s18, 1
      %s135 = smul.addr %s134, 144
      %s136 = smul.addr %s135, 4
      %s137 = scalar_lea.vmem %s1, %s136
      %p138 = pneg %p47
      %p139 = pneg %p44
      %p140 = pneg %p68
      %p141 = pneg %p65
      %p142 = pneg %p96
      %p143 = pneg %p93
      %s144 = smul.u32 12, %s19
      %p145 = scmp.lt.s32.totalorder %s18, 1
      %s146 = scalar_select %p145, %s18, 1
      %p147 = scmp.lt.s32.totalorder %s144, 47
      %s148 = scalar_select %p147, %s144, 47
      %s149 = smul.addr %s146, 48
      %s150 = sadd.s32 %s148, %s149
      %s151 = smul.addr %s150, 4
      %s152 = scalar_lea.vmem %s3, %s151
      %p153 = scmp.lt.s32.totalorder %s18, 1
      %s154 = scalar_select %p153, %s18, 1
      %s155 = smul.addr %s154, 144
      %s156 = smul.addr %s155, 4
      %s157 = scalar_lea.vmem %s1, %s156
      %s158 = smul.u32 12, %s19
      %p159 = scmp.lt.s32.totalorder %s18, 1
      %s160 = scalar_select %p159, %s18, 1
      %p161 = scmp.lt.s32.totalorder %s158, 47
      %s162 = scalar_select %p161, %s158, 47
      %s163 = smul.addr %s160, 48
      %s164 = sadd.s32 %s162, %s163
      %s165 = smul.addr %s164, 4
      %s166 = scalar_lea.vmem %s3, %s165
      %s167 = smul.u32 12, %s19
      %s169 = sand.u32 %s19, 1
      %p170 = scmp.eq.s32.totalorder %s19, 0
      // Predicated region
      $region29: #{conv_block_odconv_forward.2} parent=27 // pred_check
        %p171 = pneg %p170
      $region30: #{conv_block_odconv_forward.2} parent=27 // pred_check_branch
        %173 = sbr.rel (%p171) target = $region32
      $region31: #{conv_block_odconv_forward.2} parent=27 // pred_region
        %s174 = smul.u32 %s19, 96
        %s175 = sshra.s32 %s174, 3
        %s176 = sand.u32 %s174, 7
        %s177 = smul.u32 %s18, 55
        %s178 = sadd.s32 %s175, %s177
        %s179 = smul.addr %s178, 4
        %s180 = scalar_lea.vmem %s0, %s179
        %s181 = smul.u32 %s169, 19
        %s182 = smul.addr %s181, 4
        %s183 = scalar_lea.vmem [#allocation2], %s182
        %s184 = scalar_lea.sflag [#allocation3], %s169
        %p186 = scmp.lt.u32.totalorder 76, 8
        %p187 = pneg %p186
        // Predicated region
        $region33: #{conv_block_odconv_forward.2} parent=31 // pred_check
          _
        $region34: #{conv_block_odconv_forward.2} parent=31 // pred_check_branch
          %189 = sbr.rel (%p186) target = $region36
        $region35: #{conv_block_odconv_forward.2} parent=31 // pred_region
          %s205 = sand.u32 76, 7
          %p206 = scmp.eq.s32.totalorder %s205, 0
          %p207 = pneg %p206
          // Predicated region
          $region48: #{conv_block_odconv_forward.2} parent=35 // pred_check
            _
          $region49: #{conv_block_odconv_forward.2} parent=35 // pred_check_branch
            %209 = sbr.rel (%p206) target = $region51
          $region50: #{conv_block_odconv_forward.2} parent=35 // pred_region
            %s210 = sand.u32 76, 7
            %s211 = ssub.s32 76, %s210
            %s212 = scalar_lea.vmem %s180, %s211
            %s213 = ssub.s32 76, %s210
            %s214 = scalar_lea.vmem %s183, %s213 [#allocation2]
            loop: start=0, step=1, limit=1
            $region52: #{conv_block_odconv_forward.2} parent=50 // loop_pre_header
              _
            $region53: #{conv_block_odconv_forward.2} parent=50 // loop_header
              %s216 = sphi 0, %s220
              %p217 = scmp.ge.s32.totalorder %s216, 1
              %s221 = sphi %s180, %s180
              %s222 = sphi %s183, %s183
            $region54: #{conv_block_odconv_forward.2} parent=50 // loop_header_branch
              %219 = sbr.rel (%p217) target = $region58
            $region55: #{conv_block_odconv_forward.2} parent=50 // loop_body
              %v223 = vld [vmem:[%s221] sm:$0xff]
              %224 = vst [vmem:[%s222] sm:$0xff] %v223
              %v225 = vld [vmem:[%s221 + $0x8] sm:$0xff]
              %226 = vst [vmem:[%s222 + $0x8] sm:$0xff] %v225
              %v227 = vld [vmem:[%s221 + $0x10] sm:$0xff]
              %228 = vst [vmem:[%s222 + $0x10] sm:$0xff] %v227
              %v229 = vld [vmem:[%s221 + $0x18] sm:$0xff]
              %230 = vst [vmem:[%s222 + $0x18] sm:$0xff] %v229
              %v231 = vld [vmem:[%s221 + $0x20] sm:$0xff]
              %232 = vst [vmem:[%s222 + $0x20] sm:$0xff] %v231
              %v233 = vld [vmem:[%s221 + $0x28] sm:$0xff]
              %234 = vst [vmem:[%s222 + $0x28] sm:$0xff] %v233
              %v235 = vld [vmem:[%s221 + $0x30] sm:$0xff]
              %236 = vst [vmem:[%s222 + $0x30] sm:$0xff] %v235
              %v237 = vld [vmem:[%s221 + $0x38] sm:$0xff]
              %238 = vst [vmem:[%s222 + $0x38] sm:$0xff] %v237
              %v239 = vld [vmem:[%s221 + $0x40] sm:$0xff]
              %240 = vst [vmem:[%s222 + $0x40] sm:$0xff] %v239
            $region56: #{conv_block_odconv_forward.2} parent=50 // loop_footer
              %s220 = sadd.s32 1, %s216
            $region57: #{conv_block_odconv_forward.2} parent=50 // loop_footer_branch
              %215 = sbr.rel target = $region53
            $region58: #{conv_block_odconv_forward.2} parent=50 // loop_exit
              _
            %s241 = sshll.u32 1, %s210
            %s242 = ssub.s32 %s241, 1
            loop: start=0, step=1, limit=1
            $region59: #{conv_block_odconv_forward.2} parent=50 // loop_pre_header
              _
            $region60: #{conv_block_odconv_forward.2} parent=50 // loop_header
              %s244 = sphi 0, %s248
              %p245 = scmp.ge.s32.totalorder %s244, 1
              %s249 = sphi %s212, %s212
              %s250 = sphi %s214, %s214
            $region61: #{conv_block_odconv_forward.2} parent=50 // loop_header_branch
              %247 = sbr.rel (%p245) target = $region65
            $region62: #{conv_block_odconv_forward.2} parent=50 // loop_body
              %v251 = vld [vmem:[%s249] sm:%s242]
              %252 = vst [vmem:[%s250] sm:%s242] %v251
            $region63: #{conv_block_odconv_forward.2} parent=50 // loop_footer
              %s248 = sadd.s32 1, %s244
            $region64: #{conv_block_odconv_forward.2} parent=50 // loop_footer_branch
              %243 = sbr.rel target = $region60
            $region65: #{conv_block_odconv_forward.2} parent=50 // loop_exit
              _
          $region51: #{conv_block_odconv_forward.2} parent=35 // pred_fallthru
            _
        $region36: #{conv_block_odconv_forward.2} parent=31 // pred_fallthru
          _
        // Predicated region
        $region37: #{conv_block_odconv_forward.2} parent=31 // pred_check
          %p190 = pneg %p186
        $region38: #{conv_block_odconv_forward.2} parent=31 // pred_check_branch
          %192 = sbr.rel (%p190) target = $region40
        $region39: #{conv_block_odconv_forward.2} parent=31 // pred_region
          %s193 = sshll.u32 1, 76
          %s194 = ssub.s32 %s193, 1
          loop: start=0, step=1, limit=1
          $region41: #{conv_block_odconv_forward.2} parent=39 // loop_pre_header
            _
          $region42: #{conv_block_odconv_forward.2} parent=39 // loop_header
            %s196 = sphi 0, %s200
            %p197 = scmp.ge.s32.totalorder %s196, 1
            %s201 = sphi %s180, %s180
            %s202 = sphi %s183, %s183
          $region43: #{conv_block_odconv_forward.2} parent=39 // loop_header_branch
            %199 = sbr.rel (%p197) target = $region47
          $region44: #{conv_block_odconv_forward.2} parent=39 // loop_body
            %v203 = vld [vmem:[%s201] sm:%s194]
            %204 = vst [vmem:[%s202] sm:%s194] %v203
          $region45: #{conv_block_odconv_forward.2} parent=39 // loop_footer
            %s200 = sadd.s32 1, %s196
          $region46: #{conv_block_odconv_forward.2} parent=39 // loop_footer_branch
            %195 = sbr.rel target = $region42
          $region47: #{conv_block_odconv_forward.2} parent=39 // loop_exit
            _
        $region40: #{conv_block_odconv_forward.2} parent=31 // pred_fallthru
          _
        // Predicated region
        $region66: #{conv_block_odconv_forward.2} parent=31 // pred_check
          _
        $region67: #{conv_block_odconv_forward.2} parent=31 // pred_check_branch
          %255 = sbr.rel (0) target = $region69
        $region68: #{conv_block_odconv_forward.2} parent=31 // pred_region
          %256 = vsyncadd %s184, 1216
        $region69: #{conv_block_odconv_forward.2} parent=31 // pred_fallthru
          _
      $region32: #{conv_block_odconv_forward.2} parent=27 // pred_fallthru
        _
      %s257 = smul.u32 %s19, 96
      %s258 = smul.u32 %s169, 19
      %s259 = smul.addr %s258, 4
      %s260 = scalar_lea.vmem [#allocation2], %s259
      %s261 = scalar_lea.sflag [#allocation3], %s169
      %s262 = smul.u32 4, 19
      %s263 = smul.u32 %s262, 1
      %s264 = sshll.u32 %s263, 4
      %265 = dma.done %s261, %s264
      %s266 = sadd.s32 %s19, 1
      %p267 = scmp.lt.s32.totalorder %s266, 4
      // Predicated region
      $region70: #{conv_block_odconv_forward.2} parent=27 // pred_check
        %p268 = pneg %p267
      $region71: #{conv_block_odconv_forward.2} parent=27 // pred_check_branch
        %270 = sbr.rel (%p268) target = $region73
      $region72: #{conv_block_odconv_forward.2} parent=27 // pred_region
        %s271 = ssub.s32 1, %s169
        %s272 = smul.u32 %s266, 96
        %s273 = sshra.s32 %s272, 3
        %s274 = sand.u32 %s272, 7
        %s275 = smul.u32 %s18, 55
        %s276 = sadd.s32 %s273, %s275
        %s277 = smul.addr %s276, 4
        %s278 = scalar_lea.vmem %s0, %s277
        %s279 = smul.u32 %s271, 19
        %s280 = smul.addr %s279, 4
        %s281 = scalar_lea.vmem [#allocation2], %s280
        %s282 = scalar_lea.sflag [#allocation3], %s271
        %p284 = scmp.lt.u32.totalorder 76, 8
        %p285 = pneg %p284
        // Predicated region
        $region74: #{conv_block_odconv_forward.2} parent=72 // pred_check
          _
        $region75: #{conv_block_odconv_forward.2} parent=72 // pred_check_branch
          %287 = sbr.rel (%p284) target = $region77
        $region76: #{conv_block_odconv_forward.2} parent=72 // pred_region
          %s303 = sand.u32 76, 7
          %p304 = scmp.eq.s32.totalorder %s303, 0
          %p305 = pneg %p304
          // Predicated region
          $region89: #{conv_block_odconv_forward.2} parent=76 // pred_check
            _
          $region90: #{conv_block_odconv_forward.2} parent=76 // pred_check_branch
            %307 = sbr.rel (%p304) target = $region92
          $region91: #{conv_block_odconv_forward.2} parent=76 // pred_region
            %s308 = sand.u32 76, 7
            %s309 = ssub.s32 76, %s308
            %s310 = scalar_lea.vmem %s278, %s309
            %s311 = ssub.s32 76, %s308
            %s312 = scalar_lea.vmem %s281, %s311 [#allocation2]
            loop: start=0, step=1, limit=1
            $region93: #{conv_block_odconv_forward.2} parent=91 // loop_pre_header
              _
            $region94: #{conv_block_odconv_forward.2} parent=91 // loop_header
              %s314 = sphi 0, %s318
              %p315 = scmp.ge.s32.totalorder %s314, 1
              %s319 = sphi %s278, %s278
              %s320 = sphi %s281, %s281
            $region95: #{conv_block_odconv_forward.2} parent=91 // loop_header_branch
              %317 = sbr.rel (%p315) target = $region99
            $region96: #{conv_block_odconv_forward.2} parent=91 // loop_body
              %v321 = vld [vmem:[%s319] sm:$0xff]
              %322 = vst [vmem:[%s320] sm:$0xff] %v321
              %v323 = vld [vmem:[%s319 + $0x8] sm:$0xff]
              %324 = vst [vmem:[%s320 + $0x8] sm:$0xff] %v323
              %v325 = vld [vmem:[%s319 + $0x10] sm:$0xff]
              %326 = vst [vmem:[%s320 + $0x10] sm:$0xff] %v325
              %v327 = vld [vmem:[%s319 + $0x18] sm:$0xff]
              %328 = vst [vmem:[%s320 + $0x18] sm:$0xff] %v327
              %v329 = vld [vmem:[%s319 + $0x20] sm:$0xff]
              %330 = vst [vmem:[%s320 + $0x20] sm:$0xff] %v329
              %v331 = vld [vmem:[%s319 + $0x28] sm:$0xff]
              %332 = vst [vmem:[%s320 + $0x28] sm:$0xff] %v331
              %v333 = vld [vmem:[%s319 + $0x30] sm:$0xff]
              %334 = vst [vmem:[%s320 + $0x30] sm:$0xff] %v333
              %v335 = vld [vmem:[%s319 + $0x38] sm:$0xff]
              %336 = vst [vmem:[%s320 + $0x38] sm:$0xff] %v335
              %v337 = vld [vmem:[%s319 + $0x40] sm:$0xff]
              %338 = vst [vmem:[%s320 + $0x40] sm:$0xff] %v337
            $region97: #{conv_block_odconv_forward.2} parent=91 // loop_footer
              %s318 = sadd.s32 1, %s314
            $region98: #{conv_block_odconv_forward.2} parent=91 // loop_footer_branch
              %313 = sbr.rel target = $region94
            $region99: #{conv_block_odconv_forward.2} parent=91 // loop_exit
              _
            %s339 = sshll.u32 1, %s308
            %s340 = ssub.s32 %s339, 1
            loop: start=0, step=1, limit=1
            $region100: #{conv_block_odconv_forward.2} parent=91 // loop_pre_header
              _
            $region101: #{conv_block_odconv_forward.2} parent=91 // loop_header
              %s342 = sphi 0, %s346
              %p343 = scmp.ge.s32.totalorder %s342, 1
              %s347 = sphi %s310, %s310
              %s348 = sphi %s312, %s312
            $region102: #{conv_block_odconv_forward.2} parent=91 // loop_header_branch
              %345 = sbr.rel (%p343) target = $region106
            $region103: #{conv_block_odconv_forward.2} parent=91 // loop_body
              %v349 = vld [vmem:[%s347] sm:%s340]
              %350 = vst [vmem:[%s348] sm:%s340] %v349
            $region104: #{conv_block_odconv_forward.2} parent=91 // loop_footer
              %s346 = sadd.s32 1, %s342
            $region105: #{conv_block_odconv_forward.2} parent=91 // loop_footer_branch
              %341 = sbr.rel target = $region101
            $region106: #{conv_block_odconv_forward.2} parent=91 // loop_exit
              _
          $region92: #{conv_block_odconv_forward.2} parent=76 // pred_fallthru
            _
        $region77: #{conv_block_odconv_forward.2} parent=72 // pred_fallthru
          _
        // Predicated region
        $region78: #{conv_block_odconv_forward.2} parent=72 // pred_check
          %p288 = pneg %p284
        $region79: #{conv_block_odconv_forward.2} parent=72 // pred_check_branch
          %290 = sbr.rel (%p288) target = $region81
        $region80: #{conv_block_odconv_forward.2} parent=72 // pred_region
          %s291 = sshll.u32 1, 76
          %s292 = ssub.s32 %s291, 1
          loop: start=0, step=1, limit=1
          $region82: #{conv_block_odconv_forward.2} parent=80 // loop_pre_header
            _
          $region83: #{conv_block_odconv_forward.2} parent=80 // loop_header
            %s294 = sphi 0, %s298
            %p295 = scmp.ge.s32.totalorder %s294, 1
            %s299 = sphi %s278, %s278
            %s300 = sphi %s281, %s281
          $region84: #{conv_block_odconv_forward.2} parent=80 // loop_header_branch
            %297 = sbr.rel (%p295) target = $region88
          $region85: #{conv_block_odconv_forward.2} parent=80 // loop_body
            %v301 = vld [vmem:[%s299] sm:%s292]
            %302 = vst [vmem:[%s300] sm:%s292] %v301
          $region86: #{conv_block_odconv_forward.2} parent=80 // loop_footer
            %s298 = sadd.s32 1, %s294
          $region87: #{conv_block_odconv_forward.2} parent=80 // loop_footer_branch
            %293 = sbr.rel target = $region83
          $region88: #{conv_block_odconv_forward.2} parent=80 // loop_exit
            _
        $region81: #{conv_block_odconv_forward.2} parent=72 // pred_fallthru
          _
        // Predicated region
        $region107: #{conv_block_odconv_forward.2} parent=72 // pred_check
          _
        $region108: #{conv_block_odconv_forward.2} parent=72 // pred_check_branch
          %353 = sbr.rel (0) target = $region110
        $region109: #{conv_block_odconv_forward.2} parent=72 // pred_region
          %354 = vsyncadd %s282, 1216
        $region110: #{conv_block_odconv_forward.2} parent=72 // pred_fallthru
          _
      $region73: #{conv_block_odconv_forward.2} parent=27 // pred_fallthru
        _
      %v355 = vld [vmem:[%s260] sm:$0xf]
      %v356 = vld [vmem:[%s260 + $0x4] sm:$0xf]
      %v357 = vld [vmem:[%s260 + $0x8] sm:$0xf]
      %v358 = vld [vmem:[%s260 + $0xc] sm:$0xf]
      %v359 = vld [vmem:[%s260 + $0x10] sm:$0xf]
      %v360 = vld [vmem:[%s260 + $0x14] sm:$0xf]
      %v361 = vld [vmem:[%s260 + $0x18] sm:$0xf]
      %v362 = vld [vmem:[%s260 + $0x1c] sm:$0xf]
      %v363 = vld [vmem:[%s260 + $0x20] sm:$0xf]
      %v364 = vld [vmem:[%s260 + $0x24] sm:$0xf]
      %v365 = vld [vmem:[%s260 + $0x28] sm:$0xf]
      %v366 = vld [vmem:[%s260 + $0x2c] sm:$0xf]
      %v367 = vld [vmem:[%s260 + $0x30] sm:$0xf]
      %v368 = vld [vmem:[%s260 + $0x34] sm:$0xf]
      %v369 = vld [vmem:[%s260 + $0x38] sm:$0xf]
      %v370 = vld [vmem:[%s260 + $0x3c] sm:$0xf]
      %v371 = vld [vmem:[%s260 + $0x40] sm:$0xf]
      %v372 = vld [vmem:[%s260 + $0x44] sm:$0xf]
      %v373 = vld [vmem:[%s260] sm:$0xf]
      %v374 = vld [vmem:[%s260 + $0x4] sm:$0xf]
      %v375 = vld [vmem:[%s260 + $0x8] sm:$0xf]
      %v376 = vld [vmem:[%s260 + $0xc] sm:$0xf]
      %v377 = vld [vmem:[%s260 + $0x10] sm:$0xf]
      %v378 = vld [vmem:[%s260 + $0x14] sm:$0xf]
      %v379 = vld [vmem:[%s260 + $0x18] sm:$0xf]
      %v380 = vld [vmem:[%s260 + $0x1c] sm:$0xf]
      %v381 = vld [vmem:[%s260 + $0x20] sm:$0xf]
      %v382 = vld [vmem:[%s260 + $0x24] sm:$0xf]
      %v383 = vld [vmem:[%s260 + $0x28] sm:$0xf]
      %v384 = vld [vmem:[%s260 + $0x2c] sm:$0xf]
      %v385 = vld [vmem:[%s260 + $0x30] sm:$0xf]
      %v386 = vld [vmem:[%s260 + $0x34] sm:$0xf]
      %v387 = vld [vmem:[%s260 + $0x38] sm:$0xf]
      %v388 = vld [vmem:[%s260 + $0x3c] sm:$0xf]
      %v389 = vld [vmem:[%s260 + $0x40] sm:$0xf]
      %v390 = vld [vmem:[%s260 + $0x44] sm:$0xf]
      %v391 = vld [vmem:[%s260 + $0x48] sm:$0x1]
      %v392 = vld [vmem:[%s260] sm:$0xe]
      %v411 = vunpack.c.l.b16 %v355
      %v412 = vunpack.c.l.b16 %v356
      %v413 = vunpack.c.l.b16 %v357
      %v414 = vunpack.c.l.b16 %v358
      %v415 = vunpack.c.l.b16 %v359
      %v416 = vunpack.c.l.b16 %v360
      %v417 = vunpack.c.l.b16 %v361
      %v418 = vunpack.c.l.b16 %v362
      %v419 = vunpack.c.l.b16 %v363
      %v420 = vunpack.c.l.b16 %v364
      %v421 = vunpack.c.l.b16 %v365
      %v422 = vunpack.c.l.b16 %v366
      %v423 = vunpack.c.l.b16 %v367
      %v424 = vunpack.c.l.b16 %v368
      %v425 = vunpack.c.l.b16 %v369
      %v426 = vunpack.c.l.b16 %v370
      %v427 = vunpack.c.l.b16 %v371
      %v428 = vunpack.c.l.b16 %v372
      %v429 = vpack.c.b16 %v412, %v411
      %v430 = vpack.c.b16 %v414, %v413
      %v431 = vpack.c.b16 %v416, %v415
      %v432 = vpack.c.b16 %v418, %v417
      %v433 = vpack.c.b16 %v420, %v419
      %v434 = vpack.c.b16 %v422, %v421
      %v435 = vpack.c.b16 %v424, %v423
      %v436 = vpack.c.b16 %v426, %v425
      %v437 = vpack.c.b16 %v428, %v427
      %v466 = vunpack.c.l.b16 %v373
      %v467 = vunpack.c.l.b16 %v374
      %v468 = vunpack.c.l.b16 %v375
      %v469 = vunpack.c.l.b16 %v376
      %v470 = vunpack.c.l.b16 %v377
      %v471 = vunpack.c.l.b16 %v378
      %v472 = vunpack.c.l.b16 %v379
      %v473 = vunpack.c.l.b16 %v380
      %v474 = vunpack.c.l.b16 %v381
      %v475 = vunpack.c.l.b16 %v382
      %v476 = vunpack.c.l.b16 %v383
      %v477 = vunpack.c.l.b16 %v384
      %v478 = vunpack.c.l.b16 %v385
      %v479 = vunpack.c.l.b16 %v386
      %v480 = vunpack.c.l.b16 %v387
      %v481 = vunpack.c.l.b16 %v388
      %v482 = vunpack.c.l.b16 %v389
      %v483 = vunpack.c.l.b16 %v390
      %v484 = vunpack.c.l.b16 %v391
      %v485 = vpack.c.b16 %v467, %v466
      %v486 = vpack.c.b16 %v469, %v468
      %v487 = vpack.c.b16 %v471, %v470
      %v488 = vpack.c.b16 %v473, %v472
      %v489 = vpack.c.b16 %v475, %v474
      %v490 = vpack.c.b16 %v477, %v476
      %v491 = vpack.c.b16 %v479, %v478
      %v492 = vpack.c.b16 %v481, %v480
      %v493 = vpack.c.b16 %v483, %v482
      %v494 = vpack.c.b16 %v484, %v484
      %vm495 = vsmask.f32 7424
      %v497 = vshrl.u32 %v485, 16
      %v499 = vshll.u32 %v485, 16
      %v501 = vrot.slane %v499, 1
      %v502 = vor.u32 %v497, %v501
      %v504 = vshll.u32 %v486, 16
      %v506 = vrot.slane %v504, 1
      %v507 = vsel %vm495, %v502, %v506
      %v508 = vshrl.u32 %v486, 16
      %v510 = vor.u32 %v508, %v506
      %v512 = vshll.u32 %v487, 16
      %v514 = vrot.slane %v512, 1
      %v515 = vsel %vm495, %v510, %v514
      %v516 = vshrl.u32 %v487, 16
      %v518 = vor.u32 %v516, %v514
      %v520 = vshll.u32 %v488, 16
      %v522 = vrot.slane %v520, 1
      %v523 = vsel %vm495, %v518, %v522
      %v524 = vshrl.u32 %v488, 16
      %v526 = vor.u32 %v524, %v522
      %v528 = vshll.u32 %v489, 16
      %v530 = vrot.slane %v528, 1
      %v531 = vsel %vm495, %v526, %v530
      %v532 = vshrl.u32 %v489, 16
      %v534 = vor.u32 %v532, %v530
      %v536 = vshll.u32 %v490, 16
      %v538 = vrot.slane %v536, 1
      %v539 = vsel %vm495, %v534, %v538
      %v540 = vshrl.u32 %v490, 16
      %v542 = vor.u32 %v540, %v538
      %v544 = vshll.u32 %v491, 16
      %v546 = vrot.slane %v544, 1
      %v547 = vsel %vm495, %v542, %v546
      %v548 = vshrl.u32 %v491, 16
      %v550 = vor.u32 %v548, %v546
      %v552 = vshll.u32 %v492, 16
      %v554 = vrot.slane %v552, 1
      %v555 = vsel %vm495, %v550, %v554
      %v556 = vshrl.u32 %v492, 16
      %v558 = vor.u32 %v556, %v554
      %v560 = vshll.u32 %v493, 16
      %v562 = vrot.slane %v560, 1
      %v563 = vsel %vm495, %v558, %v562
      %v564 = vshrl.u32 %v493, 16
      %v566 = vor.u32 %v564, %v562
      %v568 = vshll.u32 %v494, 16
      %v570 = vrot.slane %v568, 1
      %v571 = vsel %vm495, %v566, %v570
      %v582 = vunpack.c.l.b16 %v392
      %v583 = vpack.c.b16 %v467, %v582
      %vm584 = vcmask 1046528
      %v585 = vrot.slane %v583, 1
      %v586 = vrot.slane %v486, 1
      %v587 = vsel %vm584, %v585, %v586
      %v588 = vrot.slane %v487, 1
      %v589 = vsel %vm584, %v586, %v588
      %v590 = vrot.slane %v488, 1
      %v591 = vsel %vm584, %v588, %v590
      %v592 = vrot.slane %v489, 1
      %v593 = vsel %vm584, %v590, %v592
      %v594 = vrot.slane %v490, 1
      %v595 = vsel %vm584, %v592, %v594
      %v596 = vrot.slane %v491, 1
      %v597 = vsel %vm584, %v594, %v596
      %v598 = vrot.slane %v492, 1
      %v599 = vsel %vm584, %v596, %v598
      %v600 = vrot.slane %v493, 1
      %v601 = vsel %vm584, %v598, %v600
      %v602 = vrot.slane %v494, 1
      %v603 = vsel %vm584, %v600, %v602
      %v613 = vld [vmem:[%s157] sm:$0xf]
      %v614 = vld [vmem:[%s157 + $0x4] sm:$0xf]
      %v615 = vld [vmem:[%s157 + $0x8] sm:$0xf]
      %v616 = vld [vmem:[%s157 + $0xc] sm:$0xf]
      %v617 = vld [vmem:[%s157 + $0x10] sm:$0xf]
      %v618 = vld [vmem:[%s157 + $0x14] sm:$0xf]
      %v619 = vld [vmem:[%s157 + $0x18] sm:$0xf]
      %v620 = vld [vmem:[%s157 + $0x1c] sm:$0xf]
      %v621 = vld [vmem:[%s157 + $0x20] sm:$0xf]
      %v622 = vld [vmem:[%s157 + $0x24] sm:$0xf]
      %v623 = vld [vmem:[%s157 + $0x28] sm:$0xf]
      %v624 = vld [vmem:[%s157 + $0x2c] sm:$0xf]
      %v625 = vld [vmem:[%s157 + $0x30] sm:$0xf]
      %v626 = vld [vmem:[%s157 + $0x34] sm:$0xf]
      %v627 = vld [vmem:[%s157 + $0x38] sm:$0xf]
      %v628 = vld [vmem:[%s157 + $0x3c] sm:$0xf]
      %v629 = vld [vmem:[%s157 + $0x40] sm:$0xf]
      %v630 = vld [vmem:[%s157 + $0x44] sm:$0xf]
      %v631 = vld [vmem:[%s157 + $0x48] sm:$0xf]
      %v632 = vld [vmem:[%s157 + $0x4c] sm:$0xf]
      %v633 = vld [vmem:[%s157 + $0x50] sm:$0xf]
      %v634 = vld [vmem:[%s157 + $0x54] sm:$0xf]
      %v635 = vld [vmem:[%s157 + $0x58] sm:$0xf]
      %v636 = vld [vmem:[%s157 + $0x5c] sm:$0xf]
      %v637 = vld [vmem:[%s157 + $0x60] sm:$0xf]
      %v638 = vld [vmem:[%s157 + $0x64] sm:$0xf]
      %v639 = vld [vmem:[%s157 + $0x68] sm:$0xf]
      %v640 = vld [vmem:[%s157 + $0x6c] sm:$0xf]
      %v641 = vld [vmem:[%s157 + $0x70] sm:$0xf]
      %v642 = vld [vmem:[%s157 + $0x74] sm:$0xf]
      %v643 = vld [vmem:[%s157 + $0x78] sm:$0xf]
      %v644 = vld [vmem:[%s157 + $0x7c] sm:$0xf]
      %v645 = vld [vmem:[%s157 + $0x80] sm:$0xf]
      %v646 = vld [vmem:[%s157 + $0x84] sm:$0xf]
      %v647 = vld [vmem:[%s157 + $0x88] sm:$0xf]
      %v648 = vld [vmem:[%s157 + $0x8c] sm:$0xf]
      %v649 = vld [vmem:[%s157 + $0x90] sm:$0xf]
      %v650 = vld [vmem:[%s157 + $0x94] sm:$0xf]
      %v651 = vld [vmem:[%s157 + $0x98] sm:$0xf]
      %v652 = vld [vmem:[%s157 + $0x9c] sm:$0xf]
      %v653 = vld [vmem:[%s157 + $0xa0] sm:$0xf]
      %v654 = vld [vmem:[%s157 + $0xa4] sm:$0xf]
      %v655 = vld [vmem:[%s157 + $0xa8] sm:$0xf]
      %v656 = vld [vmem:[%s157 + $0xac] sm:$0xf]
      %v657 = vld [vmem:[%s157 + $0xb0] sm:$0xf]
      %v658 = vld [vmem:[%s157 + $0xb4] sm:$0xf]
      %v659 = vld [vmem:[%s157 + $0xb8] sm:$0xf]
      %v660 = vld [vmem:[%s157 + $0xbc] sm:$0xf]
      %s661 = scalar_lea.vmem %s157, 192
      %v662 = vld [vmem:[%s661] sm:$0xf]
      %v663 = vld [vmem:[%s661 + $0x4] sm:$0xf]
      %v664 = vld [vmem:[%s661 + $0x8] sm:$0xf]
      %v665 = vld [vmem:[%s661 + $0xc] sm:$0xf]
      %v666 = vld [vmem:[%s661 + $0x10] sm:$0xf]
      %v667 = vld [vmem:[%s661 + $0x14] sm:$0xf]
      %v668 = vld [vmem:[%s661 + $0x18] sm:$0xf]
      %v669 = vld [vmem:[%s661 + $0x1c] sm:$0xf]
      %v670 = vld [vmem:[%s661 + $0x20] sm:$0xf]
      %v671 = vld [vmem:[%s661 + $0x24] sm:$0xf]
      %v672 = vld [vmem:[%s661 + $0x28] sm:$0xf]
      %v673 = vld [vmem:[%s661 + $0x2c] sm:$0xf]
      %v674 = vld [vmem:[%s661 + $0x30] sm:$0xf]
      %v675 = vld [vmem:[%s661 + $0x34] sm:$0xf]
      %v676 = vld [vmem:[%s661 + $0x38] sm:$0xf]
      %v677 = vld [vmem:[%s661 + $0x3c] sm:$0xf]
      %v678 = vld [vmem:[%s661 + $0x40] sm:$0xf]
      %v679 = vld [vmem:[%s661 + $0x44] sm:$0xf]
      %v680 = vld [vmem:[%s661 + $0x48] sm:$0xf]
      %v681 = vld [vmem:[%s661 + $0x4c] sm:$0xf]
      %v682 = vld [vmem:[%s661 + $0x50] sm:$0xf]
      %v683 = vld [vmem:[%s661 + $0x54] sm:$0xf]
      %v684 = vld [vmem:[%s661 + $0x58] sm:$0xf]
      %v685 = vld [vmem:[%s661 + $0x5c] sm:$0xf]
      %v686 = vld [vmem:[%s661 + $0x60] sm:$0xf]
      %v687 = vld [vmem:[%s661 + $0x64] sm:$0xf]
      %v688 = vld [vmem:[%s661 + $0x68] sm:$0xf]
      %v689 = vld [vmem:[%s661 + $0x6c] sm:$0xf]
      %v690 = vld [vmem:[%s661 + $0x70] sm:$0xf]
      %v691 = vld [vmem:[%s661 + $0x74] sm:$0xf]
      %v692 = vld [vmem:[%s661 + $0x78] sm:$0xf]
      %v693 = vld [vmem:[%s661 + $0x7c] sm:$0xf]
      %v694 = vld [vmem:[%s661 + $0x80] sm:$0xf]
      %v695 = vld [vmem:[%s661 + $0x84] sm:$0xf]
      %v696 = vld [vmem:[%s661 + $0x88] sm:$0xf]
      %v697 = vld [vmem:[%s661 + $0x8c] sm:$0xf]
      %v698 = vld [vmem:[%s661 + $0x90] sm:$0xf]
      %v699 = vld [vmem:[%s661 + $0x94] sm:$0xf]
      %v700 = vld [vmem:[%s661 + $0x98] sm:$0xf]
      %v701 = vld [vmem:[%s661 + $0x9c] sm:$0xf]
      %v702 = vld [vmem:[%s661 + $0xa0] sm:$0xf]
      %v703 = vld [vmem:[%s661 + $0xa4] sm:$0xf]
      %v704 = vld [vmem:[%s661 + $0xa8] sm:$0xf]
      %v705 = vld [vmem:[%s661 + $0xac] sm:$0xf]
      %v706 = vld [vmem:[%s661 + $0xb0] sm:$0xf]
      %v707 = vld [vmem:[%s661 + $0xb4] sm:$0xf]
      %v708 = vld [vmem:[%s661 + $0xb8] sm:$0xf]
      %v709 = vld [vmem:[%s661 + $0xbc] sm:$0xf]
      %vm710 = vcmask 1043456
      %v711 = vrot.slane %v430, 4
      %v712 = vrot.slane %v431, 4
      %v713 = vsel %vm710, %v711, %v712
      %v714 = vrot.slane %v515, 4
      %v715 = vrot.slane %v523, 4
      %v716 = vsel %vm710, %v714, %v715
      %v717 = vrot.slane %v589, 4
      %v718 = vrot.slane %v591, 4
      %v719 = vsel %vm710, %v717, %v718
      %v720 = vrot.slane %v432, 4
      %v721 = vsel %vm710, %v712, %v720
      %v722 = vrot.slane %v531, 4
      %v723 = vsel %vm710, %v715, %v722
      %v724 = vrot.slane %v593, 4
      %v725 = vsel %vm710, %v718, %v724
      %v726 = vrot.slane %v433, 4
      %v727 = vsel %vm710, %v720, %v726
      %v728 = vrot.slane %v539, 4
      %v729 = vsel %vm710, %v722, %v728
      %v730 = vrot.slane %v595, 4
      %v731 = vsel %vm710, %v724, %v730
      %v732 = vrot.slane %v434, 4
      %v733 = vsel %vm710, %v726, %v732
      %v734 = vrot.slane %v547, 4
      %v735 = vsel %vm710, %v728, %v734
      %v736 = vrot.slane %v597, 4
      %v737 = vsel %vm710, %v730, %v736
      %v738 = vrot.slane %v435, 4
      %v739 = vsel %vm710, %v732, %v738
      %v740 = vrot.slane %v555, 4
      %v741 = vsel %vm710, %v734, %v740
      %v742 = vrot.slane %v599, 4
      %v743 = vsel %vm710, %v736, %v742
      %v744 = vrot.slane %v436, 4
      %v745 = vsel %vm710, %v738, %v744
      %v746 = vrot.slane %v563, 4
      %v747 = vsel %vm710, %v740, %v746
      %v748 = vrot.slane %v601, 4
      %v749 = vsel %vm710, %v742, %v748
      %v816 = vunpack.c.l.b16 %v662
      %v817 = vunpack.c.l.b16 %v663
      %v818 = vunpack.c.l.b16 %v664
      %v819 = vunpack.c.l.b16 %v665
      %v820 = vunpack.c.l.b16 %v666
      %v821 = vunpack.c.l.b16 %v667
      %v822 = vunpack.c.l.b16 %v668
      %v823 = vunpack.c.l.b16 %v669
      %v824 = vunpack.c.l.b16 %v670
      %v825 = vunpack.c.l.b16 %v671
      %v826 = vunpack.c.l.b16 %v672
      %v827 = vunpack.c.l.b16 %v673
      %v828 = vunpack.c.l.b16 %v674
      %v829 = vunpack.c.l.b16 %v675
      %v830 = vunpack.c.l.b16 %v676
      %v831 = vunpack.c.l.b16 %v677
      %v832 = vunpack.c.l.b16 %v678
      %v833 = vunpack.c.l.b16 %v679
      %v834 = vunpack.c.l.b16 %v680
      %v835 = vunpack.c.l.b16 %v681
      %v836 = vunpack.c.l.b16 %v682
      %v837 = vunpack.c.l.b16 %v683
      %v838 = vunpack.c.l.b16 %v684
      %v839 = vunpack.c.l.b16 %v685
      %v840 = vunpack.c.l.b16 %v686
      %v841 = vunpack.c.l.b16 %v687
      %v842 = vunpack.c.l.b16 %v688
      %v843 = vunpack.c.l.b16 %v689
      %v844 = vunpack.c.l.b16 %v690
      %v845 = vunpack.c.l.b16 %v691
      %v846 = vunpack.c.l.b16 %v692
      %v847 = vunpack.c.l.b16 %v693
      %v848 = vunpack.c.l.b16 %v694
      %v849 = vunpack.c.l.b16 %v695
      %v850 = vunpack.c.l.b16 %v696
      %v851 = vunpack.c.l.b16 %v697
      %v852 = vunpack.c.l.b16 %v698
      %v853 = vunpack.c.l.b16 %v699
      %v854 = vunpack.c.l.b16 %v700
      %v855 = vunpack.c.l.b16 %v701
      %v856 = vunpack.c.l.b16 %v702
      %v857 = vunpack.c.l.b16 %v703
      %v858 = vunpack.c.l.b16 %v704
      %v859 = vunpack.c.l.b16 %v705
      %v860 = vunpack.c.l.b16 %v706
      %v861 = vunpack.c.l.b16 %v707
      %v862 = vunpack.c.l.b16 %v708
      %v863 = vunpack.c.l.b16 %v709
      %v864 = vpack.c.b16 %v817, %v816
      %v865 = vpack.c.b16 %v819, %v818
      %v866 = vpack.c.b16 %v821, %v820
      %v867 = vpack.c.b16 %v823, %v822
      %v868 = vpack.c.b16 %v825, %v824
      %v869 = vpack.c.b16 %v827, %v826
      %v870 = vpack.c.b16 %v829, %v828
      %v871 = vpack.c.b16 %v831, %v830
      %v872 = vpack.c.b16 %v833, %v832
      %v873 = vpack.c.b16 %v835, %v834
      %v874 = vpack.c.b16 %v837, %v836
      %v875 = vpack.c.b16 %v839, %v838
      %v876 = vpack.c.b16 %v841, %v840
      %v877 = vpack.c.b16 %v843, %v842
      %v878 = vpack.c.b16 %v845, %v844
      %v879 = vpack.c.b16 %v847, %v846
      %v880 = vpack.c.b16 %v849, %v848
      %v881 = vpack.c.b16 %v851, %v850
      %v882 = vpack.c.b16 %v853, %v852
      %v883 = vpack.c.b16 %v855, %v854
      %v884 = vpack.c.b16 %v857, %v856
      %v885 = vpack.c.b16 %v859, %v858
      %v886 = vpack.c.b16 %v861, %v860
      %v887 = vpack.c.b16 %v863, %v862
      %912 = vmatprep.subr.bf16.mxu0 0
      %913 = vmatpush1.bf16.msra.mxu0 %v871
      %914 = vmatprep.subr.bf16.mxu0 0
      %915 = vmatpush1.bf16.msra.mxu0 %v870
      %916 = vmatprep.subr.bf16.mxu0 0
      %917 = vmatpush1.bf16.msra.mxu0 %v869
      %918 = vmatprep.subr.bf16.mxu0 0
      %919 = vmatpush1.bf16.msra.mxu0 %v868
      %920 = vmatprep.subr.bf16.mxu0 0
      %921 = vmatpush1.bf16.msra.mxu0 %v867
      %922 = vmatprep.subr.bf16.mxu0 0
      %923 = vmatpush1.bf16.msra.mxu0 %v866
      %924 = vmatprep.subr.bf16.mxu0 0
      %925 = vmatpush1.bf16.msra.mxu0 %v865
      %926 = vmatprep.subr.bf16.mxu0 0
      %927 = vmatpush1.bf16.msra.mxu0 %v864
      %928 = vmatprep.subr.bf16.mxu0 0
      %929 = vmatpush2.bf16.msra.mxu0 %v879
      %930 = vmatprep.subr.bf16.mxu0 0
      %931 = vmatpush2.bf16.msra.mxu0 %v878
      %932 = vmatprep.subr.bf16.mxu0 0
      %933 = vmatpush2.bf16.msra.mxu0 %v877
      %934 = vmatprep.subr.bf16.mxu0 0
      %935 = vmatpush2.bf16.msra.mxu0 %v876
      %936 = vmatprep.subr.bf16.mxu0 0
      %937 = vmatpush2.bf16.msra.mxu0 %v875
      %938 = vmatprep.subr.bf16.mxu0 0
      %939 = vmatpush2.bf16.msra.mxu0 %v874
      %940 = vmatprep.subr.bf16.mxu0 0
      %941 = vmatpush2.bf16.msra.mxu0 %v873
      %942 = vmatprep.subr.bf16.mxu0 0
      %943 = vmatpush2.bf16.msra.mxu0 %v872
      %944 = vmatprep.mubr.bf16.mxu0 %v716
      %945 = vmatmul.mubr.bf16.gmra.mxu0 %v713
      %v946 = vpop.f32.mrf.mxu0
      %v947 = vadd.f32 0.0, %v946
      %v948 = vpop.f32.mrf.mxu0
      %v949 = vpop.f32.mrf.mxu0
      %v950 = vadd.f32 0.0, %v949
      %v951 = vpop.f32.mrf.mxu0
      %952 = vmatprep.mubr.bf16.mxu0 %v723
      %953 = vmatmul.mubr.bf16.gmra.mxu0 %v721
      %v954 = vpop.f32.mrf.mxu0
      %v955 = vadd.f32 0.0, %v954
      %v956 = vpop.f32.mrf.mxu0
      %v957 = vpop.f32.mrf.mxu0
      %v958 = vadd.f32 0.0, %v957
      %v959 = vpop.f32.mrf.mxu0
      %960 = vmatprep.mubr.bf16.mxu0 %v729
      %961 = vmatmul.mubr.bf16.gmra.mxu0 %v727
      %v962 = vpop.f32.mrf.mxu0
      %v963 = vadd.f32 0.0, %v962
      %v964 = vpop.f32.mrf.mxu0
      %v965 = vpop.f32.mrf.mxu0
      %v966 = vadd.f32 0.0, %v965
      %v967 = vpop.f32.mrf.mxu0
      %968 = vmatprep.mubr.bf16.mxu0 %v735
      %969 = vmatmul.mubr.bf16.gmra.mxu0 %v733
      %v970 = vpop.f32.mrf.mxu0
      %v971 = vadd.f32 0.0, %v970
      %v972 = vpop.f32.mrf.mxu0
      %v973 = vpop.f32.mrf.mxu0
      %v974 = vadd.f32 0.0, %v973
      %v975 = vpop.f32.mrf.mxu0
      %976 = vmatprep.mubr.bf16.mxu0 %v741
      %977 = vmatmul.mubr.bf16.gmra.mxu0 %v739
      %v978 = vpop.f32.mrf.mxu0
      %v979 = vadd.f32 0.0, %v978
      %v980 = vpop.f32.mrf.mxu0
      %v981 = vpop.f32.mrf.mxu0
      %v982 = vadd.f32 0.0, %v981
      %v983 = vpop.f32.mrf.mxu0
      %984 = vmatprep.mubr.bf16.mxu0 %v747
      %985 = vmatmul.mubr.bf16.gmra.mxu0 %v745
      %v986 = vpop.f32.mrf.mxu0
      %v987 = vadd.f32 0.0, %v986
      %v988 = vpop.f32.mrf.mxu0
      %v989 = vpop.f32.mrf.mxu0
      %v990 = vadd.f32 0.0, %v989
      %v991 = vpop.f32.mrf.mxu0
      %992 = vdwg.mxu0
      %993 = vmatprep.subr.bf16.mxu0 0
      %994 = vmatpush1.bf16.msra.mxu0 %v887
      %995 = vmatprep.subr.bf16.mxu0 0
      %996 = vmatpush1.bf16.msra.mxu0 %v886
      %997 = vmatprep.subr.bf16.mxu0 0
      %998 = vmatpush1.bf16.msra.mxu0 %v885
      %999 = vmatprep.subr.bf16.mxu0 0
      %1000 = vmatpush1.bf16.msra.mxu0 %v884
      %1001 = vmatprep.subr.bf16.mxu0 0
      %1002 = vmatpush1.bf16.msra.mxu0 %v883
      %1003 = vmatprep.subr.bf16.mxu0 0
      %1004 = vmatpush1.bf16.msra.mxu0 %v882
      %1005 = vmatprep.subr.bf16.mxu0 0
      %1006 = vmatpush1.bf16.msra.mxu0 %v881
      %1007 = vmatprep.subr.bf16.mxu0 0
      %1008 = vmatpush1.bf16.msra.mxu0 %v880
      %1009 = vmatprep.subr.bf16.mxu0 0
      %1010 = vmatpush2.bf16.msra.mxu0 0
      %1011 = vmatprep.subr.bf16.mxu0 0
      %1012 = vmatpush2.bf16.msra.mxu0 0
      %1013 = vmatprep.subr.bf16.mxu0 0
      %1014 = vmatpush2.bf16.msra.mxu0 0
      %1015 = vmatprep.subr.bf16.mxu0 0
      %1016 = vmatpush2.bf16.msra.mxu0 0
      %1017 = vmatprep.subr.bf16.mxu0 0
      %1018 = vmatpush2.bf16.msra.mxu0 0
      %1019 = vmatprep.subr.bf16.mxu0 0
      %1020 = vmatpush2.bf16.msra.mxu0 0
      %1021 = vmatprep.subr.bf16.mxu0 0
      %1022 = vmatpush2.bf16.msra.mxu0 0
      %1023 = vmatprep.subr.bf16.mxu0 0
      %1024 = vmatpush2.bf16.msra.mxu0 0
      %1025 = vmatprep.mubr.bf16.mxu0 0
      %1026 = vmatmul.mubr.bf16.gmra.mxu0 %v719
      %v1027 = vpop.f32.mrf.mxu0
      %v1028 = vadd.f32 %v947, %v1027
      %v1029 = vpop.f32.mrf.mxu0
      %v1030 = vpop.f32.mrf.mxu0
      %v1031 = vadd.f32 %v950, %v1030
      %v1032 = vpop.f32.mrf.mxu0
      %1033 = vmatprep.mubr.bf16.mxu0 0
      %1034 = vmatmul.mubr.bf16.gmra.mxu0 %v725
      %v1035 = vpop.f32.mrf.mxu0
      %v1036 = vadd.f32 %v955, %v1035
      %v1037 = vpop.f32.mrf.mxu0
      %v1038 = vpop.f32.mrf.mxu0
      %v1039 = vadd.f32 %v958, %v1038
      %v1040 = vpop.f32.mrf.mxu0
      %1041 = vmatprep.mubr.bf16.mxu0 0
      %1042 = vmatmul.mubr.bf16.gmra.mxu0 %v731
      %v1043 = vpop.f32.mrf.mxu0
      %v1044 = vadd.f32 %v963, %v1043
      %v1045 = vpop.f32.mrf.mxu0
      %v1046 = vpop.f32.mrf.mxu0
      %v1047 = vadd.f32 %v966, %v1046
      %v1048 = vpop.f32.mrf.mxu0
      %1049 = vmatprep.mubr.bf16.mxu0 0
      %1050 = vmatmul.mubr.bf16.gmra.mxu0 %v737
      %v1051 = vpop.f32.mrf.mxu0
      %v1052 = vadd.f32 %v971, %v1051
      %v1053 = vpop.f32.mrf.mxu0
      %v1054 = vpop.f32.mrf.mxu0
      %v1055 = vadd.f32 %v974, %v1054
      %v1056 = vpop.f32.mrf.mxu0
      %1057 = vmatprep.mubr.bf16.mxu0 0
      %1058 = vmatmul.mubr.bf16.gmra.mxu0 %v743
      %v1059 = vpop.f32.mrf.mxu0
      %v1060 = vadd.f32 %v979, %v1059
      %v1061 = vpop.f32.mrf.mxu0
      %v1062 = vpop.f32.mrf.mxu0
      %v1063 = vadd.f32 %v982, %v1062
      %v1064 = vpop.f32.mrf.mxu0
      %1065 = vmatprep.mubr.bf16.mxu0 0
      %1066 = vmatmul.mubr.bf16.gmra.mxu0 %v749
      %v1067 = vpop.f32.mrf.mxu0
      %v1068 = vadd.f32 %v987, %v1067
      %v1069 = vpop.f32.mrf.mxu0
      %v1070 = vpop.f32.mrf.mxu0
      %v1071 = vadd.f32 %v990, %v1070
      %v1072 = vpop.f32.mrf.mxu0
      %1073 = vdwg.mxu0
      %v1122 = vunpack.c.l.b16 %v613
      %v1123 = vunpack.c.l.b16 %v614
      %v1124 = vunpack.c.l.b16 %v615
      %v1125 = vunpack.c.l.b16 %v616
      %v1126 = vunpack.c.l.b16 %v617
      %v1127 = vunpack.c.l.b16 %v618
      %v1128 = vunpack.c.l.b16 %v619
      %v1129 = vunpack.c.l.b16 %v620
      %v1130 = vunpack.c.l.b16 %v621
      %v1131 = vunpack.c.l.b16 %v622
      %v1132 = vunpack.c.l.b16 %v623
      %v1133 = vunpack.c.l.b16 %v624
      %v1134 = vunpack.c.l.b16 %v625
      %v1135 = vunpack.c.l.b16 %v626
      %v1136 = vunpack.c.l.b16 %v627
      %v1137 = vunpack.c.l.b16 %v628
      %v1138 = vunpack.c.l.b16 %v629
      %v1139 = vunpack.c.l.b16 %v630
      %v1140 = vunpack.c.l.b16 %v631
      %v1141 = vunpack.c.l.b16 %v632
      %v1142 = vunpack.c.l.b16 %v633
      %v1143 = vunpack.c.l.b16 %v634
      %v1144 = vunpack.c.l.b16 %v635
      %v1145 = vunpack.c.l.b16 %v636
      %v1146 = vunpack.c.l.b16 %v637
      %v1147 = vunpack.c.l.b16 %v638
      %v1148 = vunpack.c.l.b16 %v639
      %v1149 = vunpack.c.l.b16 %v640
      %v1150 = vunpack.c.l.b16 %v641
      %v1151 = vunpack.c.l.b16 %v642
      %v1152 = vunpack.c.l.b16 %v643
      %v1153 = vunpack.c.l.b16 %v644
      %v1154 = vunpack.c.l.b16 %v645
      %v1155 = vunpack.c.l.b16 %v646
      %v1156 = vunpack.c.l.b16 %v647
      %v1157 = vunpack.c.l.b16 %v648
      %v1158 = vunpack.c.l.b16 %v649
      %v1159 = vunpack.c.l.b16 %v650
      %v1160 = vunpack.c.l.b16 %v651
      %v1161 = vunpack.c.l.b16 %v652
      %v1162 = vunpack.c.l.b16 %v653
      %v1163 = vunpack.c.l.b16 %v654
      %v1164 = vunpack.c.l.b16 %v655
      %v1165 = vunpack.c.l.b16 %v656
      %v1166 = vunpack.c.l.b16 %v657
      %v1167 = vunpack.c.l.b16 %v658
      %v1168 = vunpack.c.l.b16 %v659
      %v1169 = vunpack.c.l.b16 %v660
      %v1170 = vpack.c.b16 %v1123, %v1122
      %v1171 = vpack.c.b16 %v1125, %v1124
      %v1172 = vpack.c.b16 %v1127, %v1126
      %v1173 = vpack.c.b16 %v1129, %v1128
      %v1174 = vpack.c.b16 %v1131, %v1130
      %v1175 = vpack.c.b16 %v1133, %v1132
      %v1176 = vpack.c.b16 %v1135, %v1134
      %v1177 = vpack.c.b16 %v1137, %v1136
      %v1178 = vpack.c.b16 %v1139, %v1138
      %v1179 = vpack.c.b16 %v1141, %v1140
      %v1180 = vpack.c.b16 %v1143, %v1142
      %v1181 = vpack.c.b16 %v1145, %v1144
      %v1182 = vpack.c.b16 %v1147, %v1146
      %v1183 = vpack.c.b16 %v1149, %v1148
      %v1184 = vpack.c.b16 %v1151, %v1150
      %v1185 = vpack.c.b16 %v1153, %v1152
      %v1186 = vpack.c.b16 %v1155, %v1154
      %v1187 = vpack.c.b16 %v1157, %v1156
      %v1188 = vpack.c.b16 %v1159, %v1158
      %v1189 = vpack.c.b16 %v1161, %v1160
      %v1190 = vpack.c.b16 %v1163, %v1162
      %v1191 = vpack.c.b16 %v1165, %v1164
      %v1192 = vpack.c.b16 %v1167, %v1166
      %v1193 = vpack.c.b16 %v1169, %v1168
      %1218 = vmatprep.subr.bf16.mxu0 0
      %1219 = vmatpush1.bf16.msra.mxu0 %v1177
      %1220 = vmatprep.subr.bf16.mxu0 0
      %1221 = vmatpush1.bf16.msra.mxu0 %v1176
      %1222 = vmatprep.subr.bf16.mxu0 0
      %1223 = vmatpush1.bf16.msra.mxu0 %v1175
      %1224 = vmatprep.subr.bf16.mxu0 0
      %1225 = vmatpush1.bf16.msra.mxu0 %v1174
      %1226 = vmatprep.subr.bf16.mxu0 0
      %1227 = vmatpush1.bf16.msra.mxu0 %v1173
      %1228 = vmatprep.subr.bf16.mxu0 0
      %1229 = vmatpush1.bf16.msra.mxu0 %v1172
      %1230 = vmatprep.subr.bf16.mxu0 0
      %1231 = vmatpush1.bf16.msra.mxu0 %v1171
      %1232 = vmatprep.subr.bf16.mxu0 0
      %1233 = vmatpush1.bf16.msra.mxu0 %v1170
      %1234 = vmatprep.subr.bf16.mxu0 0
      %1235 = vmatpush2.bf16.msra.mxu0 %v1185
      %1236 = vmatprep.subr.bf16.mxu0 0
      %1237 = vmatpush2.bf16.msra.mxu0 %v1184
      %1238 = vmatprep.subr.bf16.mxu0 0
      %1239 = vmatpush2.bf16.msra.mxu0 %v1183
      %1240 = vmatprep.subr.bf16.mxu0 0
      %1241 = vmatpush2.bf16.msra.mxu0 %v1182
      %1242 = vmatprep.subr.bf16.mxu0 0
      %1243 = vmatpush2.bf16.msra.mxu0 %v1181
      %1244 = vmatprep.subr.bf16.mxu0 0
      %1245 = vmatpush2.bf16.msra.mxu0 %v1180
      %1246 = vmatprep.subr.bf16.mxu0 0
      %1247 = vmatpush2.bf16.msra.mxu0 %v1179
      %1248 = vmatprep.subr.bf16.mxu0 0
      %1249 = vmatpush2.bf16.msra.mxu0 %v1178
      %1250 = vmatprep.mubr.bf16.mxu0 %v507
      %1251 = vmatmul.mubr.bf16.gmra.mxu0 %v429
      %v1252 = vpop.f32.mrf.mxu0
      %v1253 = vadd.f32 %v1028, %v1252
      %v1254 = vpop.f32.mrf.mxu0
      %v1255 = vpop.f32.mrf.mxu0
      %v1256 = vadd.f32 %v1031, %v1255
      %v1257 = vpop.f32.mrf.mxu0
      %1258 = vmatprep.mubr.bf16.mxu0 %v515
      %1259 = vmatmul.mubr.bf16.gmra.mxu0 %v430
      %v1260 = vpop.f32.mrf.mxu0
      %v1261 = vadd.f32 %v1036, %v1260
      %v1262 = vpop.f32.mrf.mxu0
      %v1263 = vpop.f32.mrf.mxu0
      %v1264 = vadd.f32 %v1039, %v1263
      %v1265 = vpop.f32.mrf.mxu0
      %1266 = vmatprep.mubr.bf16.mxu0 %v523
      %1267 = vmatmul.mubr.bf16.gmra.mxu0 %v431
      %v1268 = vpop.f32.mrf.mxu0
      %v1269 = vadd.f32 %v1044, %v1268
      %v1270 = vpop.f32.mrf.mxu0
      %v1271 = vpop.f32.mrf.mxu0
      %v1272 = vadd.f32 %v1047, %v1271
      %v1273 = vpop.f32.mrf.mxu0
      %1274 = vmatprep.mubr.bf16.mxu0 %v531
      %1275 = vmatmul.mubr.bf16.gmra.mxu0 %v432
      %v1276 = vpop.f32.mrf.mxu0
      %v1277 = vadd.f32 %v1052, %v1276
      %v1278 = vpop.f32.mrf.mxu0
      %v1279 = vpop.f32.mrf.mxu0
      %v1280 = vadd.f32 %v1055, %v1279
      %v1281 = vpop.f32.mrf.mxu0
      %1282 = vmatprep.mubr.bf16.mxu0 %v539
      %1283 = vmatmul.mubr.bf16.gmra.mxu0 %v433
      %v1284 = vpop.f32.mrf.mxu0
      %v1285 = vadd.f32 %v1060, %v1284
      %v1286 = vpop.f32.mrf.mxu0
      %v1287 = vpop.f32.mrf.mxu0
      %v1288 = vadd.f32 %v1063, %v1287
      %v1289 = vpop.f32.mrf.mxu0
      %1290 = vmatprep.mubr.bf16.mxu0 %v547
      %1291 = vmatmul.mubr.bf16.gmra.mxu0 %v434
      %v1292 = vpop.f32.mrf.mxu0
      %v1293 = vadd.f32 %v1068, %v1292
      %v1294 = vpop.f32.mrf.mxu0
      %v1295 = vpop.f32.mrf.mxu0
      %v1296 = vadd.f32 %v1071, %v1295
      %v1297 = vpop.f32.mrf.mxu0
      %1298 = vdwg.mxu0
      %1299 = vmatprep.subr.bf16.mxu0 0
      %1300 = vmatpush1.bf16.msra.mxu0 %v1193
      %1301 = vmatprep.subr.bf16.mxu0 0
      %1302 = vmatpush1.bf16.msra.mxu0 %v1192
      %1303 = vmatprep.subr.bf16.mxu0 0
      %1304 = vmatpush1.bf16.msra.mxu0 %v1191
      %1305 = vmatprep.subr.bf16.mxu0 0
      %1306 = vmatpush1.bf16.msra.mxu0 %v1190
      %1307 = vmatprep.subr.bf16.mxu0 0
      %1308 = vmatpush1.bf16.msra.mxu0 %v1189
      %1309 = vmatprep.subr.bf16.mxu0 0
      %1310 = vmatpush1.bf16.msra.mxu0 %v1188
      %1311 = vmatprep.subr.bf16.mxu0 0
      %1312 = vmatpush1.bf16.msra.mxu0 %v1187
      %1313 = vmatprep.subr.bf16.mxu0 0
      %1314 = vmatpush1.bf16.msra.mxu0 %v1186
      %1315 = vmatprep.subr.bf16.mxu0 0
      %1316 = vmatpush2.bf16.msra.mxu0 0
      %1317 = vmatprep.subr.bf16.mxu0 0
      %1318 = vmatpush2.bf16.msra.mxu0 0
      %1319 = vmatprep.subr.bf16.mxu0 0
      %1320 = vmatpush2.bf16.msra.mxu0 0
      %1321 = vmatprep.subr.bf16.mxu0 0
      %1322 = vmatpush2.bf16.msra.mxu0 0
      %1323 = vmatprep.subr.bf16.mxu0 0
      %1324 = vmatpush2.bf16.msra.mxu0 0
      %1325 = vmatprep.subr.bf16.mxu0 0
      %1326 = vmatpush2.bf16.msra.mxu0 0
      %1327 = vmatprep.subr.bf16.mxu0 0
      %1328 = vmatpush2.bf16.msra.mxu0 0
      %1329 = vmatprep.subr.bf16.mxu0 0
      %1330 = vmatpush2.bf16.msra.mxu0 0
      %1331 = vmatprep.mubr.bf16.mxu0 0
      %1332 = vmatmul.mubr.bf16.gmra.mxu0 %v587
      %v1333 = vpop.f32.mrf.mxu0
      %v1334 = vadd.f32 %v1253, %v1333
      %v1335 = vpop.f32.mrf.mxu0
      %v1336 = vpop.f32.mrf.mxu0
      %v1337 = vadd.f32 %v1256, %v1336
      %v1338 = vpop.f32.mrf.mxu0
      %1339 = vmatprep.mubr.bf16.mxu0 0
      %1340 = vmatmul.mubr.bf16.gmra.mxu0 %v589
      %v1341 = vpop.f32.mrf.mxu0
      %v1342 = vadd.f32 %v1261, %v1341
      %v1343 = vpop.f32.mrf.mxu0
      %v1344 = vpop.f32.mrf.mxu0
      %v1345 = vadd.f32 %v1264, %v1344
      %v1346 = vpop.f32.mrf.mxu0
      %1347 = vmatprep.mubr.bf16.mxu0 0
      %1348 = vmatmul.mubr.bf16.gmra.mxu0 %v591
      %v1349 = vpop.f32.mrf.mxu0
      %v1350 = vadd.f32 %v1269, %v1349
      %v1351 = vpop.f32.mrf.mxu0
      %v1352 = vpop.f32.mrf.mxu0
      %v1353 = vadd.f32 %v1272, %v1352
      %v1354 = vpop.f32.mrf.mxu0
      %1355 = vmatprep.mubr.bf16.mxu0 0
      %1356 = vmatmul.mubr.bf16.gmra.mxu0 %v593
      %v1357 = vpop.f32.mrf.mxu0
      %v1358 = vadd.f32 %v1277, %v1357
      %v1359 = vpop.f32.mrf.mxu0
      %v1360 = vpop.f32.mrf.mxu0
      %v1361 = vadd.f32 %v1280, %v1360
      %v1362 = vpop.f32.mrf.mxu0
      %1363 = vmatprep.mubr.bf16.mxu0 0
      %1364 = vmatmul.mubr.bf16.gmra.mxu0 %v595
      %v1365 = vpop.f32.mrf.mxu0
      %v1366 = vadd.f32 %v1285, %v1365
      %v1367 = vpop.f32.mrf.mxu0
      %v1368 = vpop.f32.mrf.mxu0
      %v1369 = vadd.f32 %v1288, %v1368
      %v1370 = vpop.f32.mrf.mxu0
      %1371 = vmatprep.mubr.bf16.mxu0 0
      %1372 = vmatmul.mubr.bf16.gmra.mxu0 %v597
      %v1373 = vpop.f32.mrf.mxu0
      %v1374 = vadd.f32 %v1293, %v1373
      %v1375 = vpop.f32.mrf.mxu0
      %v1376 = vpop.f32.mrf.mxu0
      %v1377 = vadd.f32 %v1296, %v1376
      %v1378 = vpop.f32.mrf.mxu0
      %1379 = vdwg.mxu0
      %s1380 = scalar_lea.vmem %s157, 384
      %v1381 = vld [vmem:[%s1380] sm:$0xf]
      %v1382 = vld [vmem:[%s1380 + $0x4] sm:$0xf]
      %v1383 = vld [vmem:[%s1380 + $0x8] sm:$0xf]
      %v1384 = vld [vmem:[%s1380 + $0xc] sm:$0xf]
      %v1385 = vld [vmem:[%s1380 + $0x10] sm:$0xf]
      %v1386 = vld [vmem:[%s1380 + $0x14] sm:$0xf]
      %v1387 = vld [vmem:[%s1380 + $0x18] sm:$0xf]
      %v1388 = vld [vmem:[%s1380 + $0x1c] sm:$0xf]
      %v1389 = vld [vmem:[%s1380 + $0x20] sm:$0xf]
      %v1390 = vld [vmem:[%s1380 + $0x24] sm:$0xf]
      %v1391 = vld [vmem:[%s1380 + $0x28] sm:$0xf]
      %v1392 = vld [vmem:[%s1380 + $0x2c] sm:$0xf]
      %v1393 = vld [vmem:[%s1380 + $0x30] sm:$0xf]
      %v1394 = vld [vmem:[%s1380 + $0x34] sm:$0xf]
      %v1395 = vld [vmem:[%s1380 + $0x38] sm:$0xf]
      %v1396 = vld [vmem:[%s1380 + $0x3c] sm:$0xf]
      %v1397 = vld [vmem:[%s1380 + $0x40] sm:$0xf]
      %v1398 = vld [vmem:[%s1380 + $0x44] sm:$0xf]
      %v1399 = vld [vmem:[%s1380 + $0x48] sm:$0xf]
      %v1400 = vld [vmem:[%s1380 + $0x4c] sm:$0xf]
      %v1401 = vld [vmem:[%s1380 + $0x50] sm:$0xf]
      %v1402 = vld [vmem:[%s1380 + $0x54] sm:$0xf]
      %v1403 = vld [vmem:[%s1380 + $0x58] sm:$0xf]
      %v1404 = vld [vmem:[%s1380 + $0x5c] sm:$0xf]
      %v1405 = vld [vmem:[%s1380 + $0x60] sm:$0xf]
      %v1406 = vld [vmem:[%s1380 + $0x64] sm:$0xf]
      %v1407 = vld [vmem:[%s1380 + $0x68] sm:$0xf]
      %v1408 = vld [vmem:[%s1380 + $0x6c] sm:$0xf]
      %v1409 = vld [vmem:[%s1380 + $0x70] sm:$0xf]
      %v1410 = vld [vmem:[%s1380 + $0x74] sm:$0xf]
      %v1411 = vld [vmem:[%s1380 + $0x78] sm:$0xf]
      %v1412 = vld [vmem:[%s1380 + $0x7c] sm:$0xf]
      %v1413 = vld [vmem:[%s1380 + $0x80] sm:$0xf]
      %v1414 = vld [vmem:[%s1380 + $0x84] sm:$0xf]
      %v1415 = vld [vmem:[%s1380 + $0x88] sm:$0xf]
      %v1416 = vld [vmem:[%s1380 + $0x8c] sm:$0xf]
      %v1417 = vld [vmem:[%s1380 + $0x90] sm:$0xf]
      %v1418 = vld [vmem:[%s1380 + $0x94] sm:$0xf]
      %v1419 = vld [vmem:[%s1380 + $0x98] sm:$0xf]
      %v1420 = vld [vmem:[%s1380 + $0x9c] sm:$0xf]
      %v1421 = vld [vmem:[%s1380 + $0xa0] sm:$0xf]
      %v1422 = vld [vmem:[%s1380 + $0xa4] sm:$0xf]
      %v1423 = vld [vmem:[%s1380 + $0xa8] sm:$0xf]
      %v1424 = vld [vmem:[%s1380 + $0xac] sm:$0xf]
      %v1425 = vld [vmem:[%s1380 + $0xb0] sm:$0xf]
      %v1426 = vld [vmem:[%s1380 + $0xb4] sm:$0xf]
      %v1427 = vld [vmem:[%s1380 + $0xb8] sm:$0xf]
      %v1428 = vld [vmem:[%s1380 + $0xbc] sm:$0xf]
      %v1477 = vunpack.c.l.b16 %v1381
      %v1478 = vunpack.c.l.b16 %v1382
      %v1479 = vunpack.c.l.b16 %v1383
      %v1480 = vunpack.c.l.b16 %v1384
      %v1481 = vunpack.c.l.b16 %v1385
      %v1482 = vunpack.c.l.b16 %v1386
      %v1483 = vunpack.c.l.b16 %v1387
      %v1484 = vunpack.c.l.b16 %v1388
      %v1485 = vunpack.c.l.b16 %v1389
      %v1486 = vunpack.c.l.b16 %v1390
      %v1487 = vunpack.c.l.b16 %v1391
      %v1488 = vunpack.c.l.b16 %v1392
      %v1489 = vunpack.c.l.b16 %v1393
      %v1490 = vunpack.c.l.b16 %v1394
      %v1491 = vunpack.c.l.b16 %v1395
      %v1492 = vunpack.c.l.b16 %v1396
      %v1493 = vunpack.c.l.b16 %v1397
      %v1494 = vunpack.c.l.b16 %v1398
      %v1495 = vunpack.c.l.b16 %v1399
      %v1496 = vunpack.c.l.b16 %v1400
      %v1497 = vunpack.c.l.b16 %v1401
      %v1498 = vunpack.c.l.b16 %v1402
      %v1499 = vunpack.c.l.b16 %v1403
      %v1500 = vunpack.c.l.b16 %v1404
      %v1501 = vunpack.c.l.b16 %v1405
      %v1502 = vunpack.c.l.b16 %v1406
      %v1503 = vunpack.c.l.b16 %v1407
      %v1504 = vunpack.c.l.b16 %v1408
      %v1505 = vunpack.c.l.b16 %v1409
      %v1506 = vunpack.c.l.b16 %v1410
      %v1507 = vunpack.c.l.b16 %v1411
      %v1508 = vunpack.c.l.b16 %v1412
      %v1509 = vunpack.c.l.b16 %v1413
      %v1510 = vunpack.c.l.b16 %v1414
      %v1511 = vunpack.c.l.b16 %v1415
      %v1512 = vunpack.c.l.b16 %v1416
      %v1513 = vunpack.c.l.b16 %v1417
      %v1514 = vunpack.c.l.b16 %v1418
      %v1515 = vunpack.c.l.b16 %v1419
      %v1516 = vunpack.c.l.b16 %v1420
      %v1517 = vunpack.c.l.b16 %v1421
      %v1518 = vunpack.c.l.b16 %v1422
      %v1519 = vunpack.c.l.b16 %v1423
      %v1520 = vunpack.c.l.b16 %v1424
      %v1521 = vunpack.c.l.b16 %v1425
      %v1522 = vunpack.c.l.b16 %v1426
      %v1523 = vunpack.c.l.b16 %v1427
      %v1524 = vunpack.c.l.b16 %v1428
      %v1525 = vpack.c.b16 %v1478, %v1477
      %v1526 = vpack.c.b16 %v1480, %v1479
      %v1527 = vpack.c.b16 %v1482, %v1481
      %v1528 = vpack.c.b16 %v1484, %v1483
      %v1529 = vpack.c.b16 %v1486, %v1485
      %v1530 = vpack.c.b16 %v1488, %v1487
      %v1531 = vpack.c.b16 %v1490, %v1489
      %v1532 = vpack.c.b16 %v1492, %v1491
      %v1533 = vpack.c.b16 %v1494, %v1493
      %v1534 = vpack.c.b16 %v1496, %v1495
      %v1535 = vpack.c.b16 %v1498, %v1497
      %v1536 = vpack.c.b16 %v1500, %v1499
      %v1537 = vpack.c.b16 %v1502, %v1501
      %v1538 = vpack.c.b16 %v1504, %v1503
      %v1539 = vpack.c.b16 %v1506, %v1505
      %v1540 = vpack.c.b16 %v1508, %v1507
      %v1541 = vpack.c.b16 %v1510, %v1509
      %v1542 = vpack.c.b16 %v1512, %v1511
      %v1543 = vpack.c.b16 %v1514, %v1513
      %v1544 = vpack.c.b16 %v1516, %v1515
      %v1545 = vpack.c.b16 %v1518, %v1517
      %v1546 = vpack.c.b16 %v1520, %v1519
      %v1547 = vpack.c.b16 %v1522, %v1521
      %v1548 = vpack.c.b16 %v1524, %v1523
      %1573 = vmatprep.subr.bf16.mxu0 0
      %1574 = vmatpush1.bf16.msra.mxu0 %v1532
      %1575 = vmatprep.subr.bf16.mxu0 0
      %1576 = vmatpush1.bf16.msra.mxu0 %v1531
      %1577 = vmatprep.subr.bf16.mxu0 0
      %1578 = vmatpush1.bf16.msra.mxu0 %v1530
      %1579 = vmatprep.subr.bf16.mxu0 0
      %1580 = vmatpush1.bf16.msra.mxu0 %v1529
      %1581 = vmatprep.subr.bf16.mxu0 0
      %1582 = vmatpush1.bf16.msra.mxu0 %v1528
      %1583 = vmatprep.subr.bf16.mxu0 0
      %1584 = vmatpush1.bf16.msra.mxu0 %v1527
      %1585 = vmatprep.subr.bf16.mxu0 0
      %1586 = vmatpush1.bf16.msra.mxu0 %v1526
      %1587 = vmatprep.subr.bf16.mxu0 0
      %1588 = vmatpush1.bf16.msra.mxu0 %v1525
      %1589 = vmatprep.subr.bf16.mxu0 0
      %1590 = vmatpush2.bf16.msra.mxu0 %v1540
      %1591 = vmatprep.subr.bf16.mxu0 0
      %1592 = vmatpush2.bf16.msra.mxu0 %v1539
      %1593 = vmatprep.subr.bf16.mxu0 0
      %1594 = vmatpush2.bf16.msra.mxu0 %v1538
      %1595 = vmatprep.subr.bf16.mxu0 0
      %1596 = vmatpush2.bf16.msra.mxu0 %v1537
      %1597 = vmatprep.subr.bf16.mxu0 0
      %1598 = vmatpush2.bf16.msra.mxu0 %v1536
      %1599 = vmatprep.subr.bf16.mxu0 0
      %1600 = vmatpush2.bf16.msra.mxu0 %v1535
      %1601 = vmatprep.subr.bf16.mxu0 0
      %1602 = vmatpush2.bf16.msra.mxu0 %v1534
      %1603 = vmatprep.subr.bf16.mxu0 0
      %1604 = vmatpush2.bf16.msra.mxu0 %v1533
      %1605 = vmatprep.mubr.bf16.mxu0 %v531
      %1606 = vmatmul.mubr.bf16.gmra.mxu0 %v432
      %v1607 = vpop.f32.mrf.mxu0
      %v1608 = vadd.f32 0.0, %v1607
      %v1609 = vpop.f32.mrf.mxu0
      %v1610 = vpop.f32.mrf.mxu0
      %v1611 = vadd.f32 0.0, %v1610
      %v1612 = vpop.f32.mrf.mxu0
      %1613 = vmatprep.mubr.bf16.mxu0 %v539
      %1614 = vmatmul.mubr.bf16.gmra.mxu0 %v433
      %v1615 = vpop.f32.mrf.mxu0
      %v1616 = vadd.f32 0.0, %v1615
      %v1617 = vpop.f32.mrf.mxu0
      %v1618 = vpop.f32.mrf.mxu0
      %v1619 = vadd.f32 0.0, %v1618
      %v1620 = vpop.f32.mrf.mxu0
      %1621 = vmatprep.mubr.bf16.mxu0 %v547
      %1622 = vmatmul.mubr.bf16.gmra.mxu0 %v434
      %v1623 = vpop.f32.mrf.mxu0
      %v1624 = vadd.f32 0.0, %v1623
      %v1625 = vpop.f32.mrf.mxu0
      %v1626 = vpop.f32.mrf.mxu0
      %v1627 = vadd.f32 0.0, %v1626
      %v1628 = vpop.f32.mrf.mxu0
      %1629 = vmatprep.mubr.bf16.mxu0 %v555
      %1630 = vmatmul.mubr.bf16.gmra.mxu0 %v435
      %v1631 = vpop.f32.mrf.mxu0
      %v1632 = vadd.f32 0.0, %v1631
      %v1633 = vpop.f32.mrf.mxu0
      %v1634 = vpop.f32.mrf.mxu0
      %v1635 = vadd.f32 0.0, %v1634
      %v1636 = vpop.f32.mrf.mxu0
      %1637 = vmatprep.mubr.bf16.mxu0 %v563
      %1638 = vmatmul.mubr.bf16.gmra.mxu0 %v436
      %v1639 = vpop.f32.mrf.mxu0
      %v1640 = vadd.f32 0.0, %v1639
      %v1641 = vpop.f32.mrf.mxu0
      %v1642 = vpop.f32.mrf.mxu0
      %v1643 = vadd.f32 0.0, %v1642
      %v1644 = vpop.f32.mrf.mxu0
      %1645 = vmatprep.mubr.bf16.mxu0 %v571
      %1646 = vmatmul.mubr.bf16.gmra.mxu0 %v437
      %v1647 = vpop.f32.mrf.mxu0
      %v1648 = vadd.f32 0.0, %v1647
      %v1649 = vpop.f32.mrf.mxu0
      %v1650 = vpop.f32.mrf.mxu0
      %v1651 = vadd.f32 0.0, %v1650
      %v1652 = vpop.f32.mrf.mxu0
      %1653 = vdwg.mxu0
      %1654 = vmatprep.subr.bf16.mxu0 0
      %1655 = vmatpush1.bf16.msra.mxu0 %v1548
      %1656 = vmatprep.subr.bf16.mxu0 0
      %1657 = vmatpush1.bf16.msra.mxu0 %v1547
      %1658 = vmatprep.subr.bf16.mxu0 0
      %1659 = vmatpush1.bf16.msra.mxu0 %v1546
      %1660 = vmatprep.subr.bf16.mxu0 0
      %1661 = vmatpush1.bf16.msra.mxu0 %v1545
      %1662 = vmatprep.subr.bf16.mxu0 0
      %1663 = vmatpush1.bf16.msra.mxu0 %v1544
      %1664 = vmatprep.subr.bf16.mxu0 0
      %1665 = vmatpush1.bf16.msra.mxu0 %v1543
      %1666 = vmatprep.subr.bf16.mxu0 0
      %1667 = vmatpush1.bf16.msra.mxu0 %v1542
      %1668 = vmatprep.subr.bf16.mxu0 0
      %1669 = vmatpush1.bf16.msra.mxu0 %v1541
      %1670 = vmatprep.subr.bf16.mxu0 0
      %1671 = vmatpush2.bf16.msra.mxu0 0
      %1672 = vmatprep.subr.bf16.mxu0 0
      %1673 = vmatpush2.bf16.msra.mxu0 0
      %1674 = vmatprep.subr.bf16.mxu0 0
      %1675 = vmatpush2.bf16.msra.mxu0 0
      %1676 = vmatprep.subr.bf16.mxu0 0
      %1677 = vmatpush2.bf16.msra.mxu0 0
      %1678 = vmatprep.subr.bf16.mxu0 0
      %1679 = vmatpush2.bf16.msra.mxu0 0
      %1680 = vmatprep.subr.bf16.mxu0 0
      %1681 = vmatpush2.bf16.msra.mxu0 0
      %1682 = vmatprep.subr.bf16.mxu0 0
      %1683 = vmatpush2.bf16.msra.mxu0 0
      %1684 = vmatprep.subr.bf16.mxu0 0
      %1685 = vmatpush2.bf16.msra.mxu0 0
      %1686 = vmatprep.mubr.bf16.mxu0 0
      %1687 = vmatmul.mubr.bf16.gmra.mxu0 %v593
      %v1688 = vpop.f32.mrf.mxu0
      %v1689 = vadd.f32 %v1608, %v1688
      %v1690 = vpop.f32.mrf.mxu0
      %v1691 = vpop.f32.mrf.mxu0
      %v1692 = vadd.f32 %v1611, %v1691
      %v1693 = vpop.f32.mrf.mxu0
      %1694 = vmatprep.mubr.bf16.mxu0 0
      %1695 = vmatmul.mubr.bf16.gmra.mxu0 %v595
      %v1696 = vpop.f32.mrf.mxu0
      %v1697 = vadd.f32 %v1616, %v1696
      %v1698 = vpop.f32.mrf.mxu0
      %v1699 = vpop.f32.mrf.mxu0
      %v1700 = vadd.f32 %v1619, %v1699
      %v1701 = vpop.f32.mrf.mxu0
      %1702 = vmatprep.mubr.bf16.mxu0 0
      %1703 = vmatmul.mubr.bf16.gmra.mxu0 %v597
      %v1704 = vpop.f32.mrf.mxu0
      %v1705 = vadd.f32 %v1624, %v1704
      %v1706 = vpop.f32.mrf.mxu0
      %v1707 = vpop.f32.mrf.mxu0
      %v1708 = vadd.f32 %v1627, %v1707
      %v1709 = vpop.f32.mrf.mxu0
      %1710 = vmatprep.mubr.bf16.mxu0 0
      %1711 = vmatmul.mubr.bf16.gmra.mxu0 %v599
      %v1712 = vpop.f32.mrf.mxu0
      %v1713 = vadd.f32 %v1632, %v1712
      %v1714 = vpop.f32.mrf.mxu0
      %v1715 = vpop.f32.mrf.mxu0
      %v1716 = vadd.f32 %v1635, %v1715
      %v1717 = vpop.f32.mrf.mxu0
      %1718 = vmatprep.mubr.bf16.mxu0 0
      %1719 = vmatmul.mubr.bf16.gmra.mxu0 %v601
      %v1720 = vpop.f32.mrf.mxu0
      %v1721 = vadd.f32 %v1640, %v1720
      %v1722 = vpop.f32.mrf.mxu0
      %v1723 = vpop.f32.mrf.mxu0
      %v1724 = vadd.f32 %v1643, %v1723
      %v1725 = vpop.f32.mrf.mxu0
      %1726 = vmatprep.mubr.bf16.mxu0 0
      %1727 = vmatmul.mubr.bf16.gmra.mxu0 %v603
      %v1728 = vpop.f32.mrf.mxu0
      %v1729 = vadd.f32 %v1648, %v1728
      %v1730 = vpop.f32.mrf.mxu0
      %v1731 = vpop.f32.mrf.mxu0
      %v1732 = vadd.f32 %v1651, %v1731
      %v1733 = vpop.f32.mrf.mxu0
      %1734 = vdwg.mxu0
      %v1735 = vadd.f32 %v1334, %v1689
      %v1736 = vadd.f32 %v1337, %v1692
      %v1737 = vadd.f32 %v1342, %v1697
      %v1738 = vadd.f32 %v1345, %v1700
      %v1739 = vadd.f32 %v1350, %v1705
      %v1740 = vadd.f32 %v1353, %v1708
      %v1741 = vadd.f32 %v1358, %v1713
      %v1742 = vadd.f32 %v1361, %v1716
      %v1743 = vadd.f32 %v1366, %v1721
      %v1744 = vadd.f32 %v1369, %v1724
      %v1745 = vadd.f32 %v1374, %v1729
      %v1746 = vadd.f32 %v1377, %v1732
      %v1747 = vld [vmem:[%s2] sm:$0x1]
      %v1749 = vlaneseq
      %v1750 = vshrl.u32 %v1749, 7
      %v1751 = vsub.s32 0, %v1750
      %v1752 = vrot.slane %v1747, %v1751
      %v1754 = vadd.f32 %v1735, %v1752
      %v1755 = vadd.f32 %v1736, %v1752
      %v1756 = vadd.f32 %v1737, %v1752
      %v1757 = vadd.f32 %v1738, %v1752
      %v1758 = vadd.f32 %v1739, %v1752
      %v1759 = vadd.f32 %v1740, %v1752
      %v1760 = vadd.f32 %v1741, %v1752
      %v1761 = vadd.f32 %v1742, %v1752
      %v1762 = vadd.f32 %v1743, %v1752
      %v1763 = vadd.f32 %v1744, %v1752
      %v1764 = vadd.f32 %v1745, %v1752
      %v1765 = vadd.f32 %v1746, %v1752
      %v1766 = vmax.f32 %v1754, 0.0
      %v1767 = vmax.f32 %v1755, 0.0
      %v1768 = vmax.f32 %v1756, 0.0
      %v1769 = vmax.f32 %v1757, 0.0
      %v1770 = vmax.f32 %v1758, 0.0
      %v1771 = vmax.f32 %v1759, 0.0
      %v1772 = vmax.f32 %v1760, 0.0
      %v1773 = vmax.f32 %v1761, 0.0
      %v1774 = vmax.f32 %v1762, 0.0
      %v1775 = vmax.f32 %v1763, 0.0
      %v1776 = vmax.f32 %v1764, 0.0
      %v1777 = vmax.f32 %v1765, 0.0
      %v1778 = vpack.c.bf16 %v1767, %v1766
      %v1779 = vpack.c.bf16 %v1769, %v1768
      %v1780 = vpack.c.bf16 %v1771, %v1770
      %v1781 = vpack.c.bf16 %v1773, %v1772
      %v1782 = vpack.c.bf16 %v1775, %v1774
      %v1783 = vpack.c.bf16 %v1777, %v1776
      %v1790 = vunpack.c.l.b16 %v1778
      %v1791 = vunpack.c.h.b16 %v1778
      %v1792 = vunpack.c.l.b16 %v1779
      %v1793 = vunpack.c.h.b16 %v1779
      %v1794 = vunpack.c.l.b16 %v1780
      %v1795 = vunpack.c.h.b16 %v1780
      %v1796 = vunpack.c.l.b16 %v1781
      %v1797 = vunpack.c.h.b16 %v1781
      %v1798 = vunpack.c.l.b16 %v1782
      %v1799 = vunpack.c.h.b16 %v1782
      %v1800 = vunpack.c.l.b16 %v1783
      %v1801 = vunpack.c.h.b16 %v1783
      %v1802 = vpack.c.b16 %v1790, %v1790
      %v1803 = vpack.c.b16 %v1791, %v1791
      %v1804 = vpack.c.b16 %v1792, %v1792
      %v1805 = vpack.c.b16 %v1793, %v1793
      %v1806 = vpack.c.b16 %v1794, %v1794
      %v1807 = vpack.c.b16 %v1795, %v1795
      %v1808 = vpack.c.b16 %v1796, %v1796
      %v1809 = vpack.c.b16 %v1797, %v1797
      %v1810 = vpack.c.b16 %v1798, %v1798
      %v1811 = vpack.c.b16 %v1799, %v1799
      %v1812 = vpack.c.b16 %v1800, %v1800
      %v1813 = vpack.c.b16 %v1801, %v1801
      %1826 = vst [vmem:[%s166] sm:$0xf] %v1802
      %1827 = vst [vmem:[%s166 + $0x4] sm:$0xf] %v1803
      %1828 = vst [vmem:[%s166 + $0x8] sm:$0xf] %v1804
      %1829 = vst [vmem:[%s166 + $0xc] sm:$0xf] %v1805
      %1830 = vst [vmem:[%s166 + $0x10] sm:$0xf] %v1806
      %1831 = vst [vmem:[%s166 + $0x14] sm:$0xf] %v1807
      %1832 = vst [vmem:[%s166 + $0x18] sm:$0xf] %v1808
      %1833 = vst [vmem:[%s166 + $0x1c] sm:$0xf] %v1809
      %1834 = vst [vmem:[%s166 + $0x20] sm:$0xf] %v1810
      %1835 = vst [vmem:[%s166 + $0x24] sm:$0xf] %v1811
      %1836 = vst [vmem:[%s166 + $0x28] sm:$0xf] %v1812
      %1837 = vst [vmem:[%s166 + $0x2c] sm:$0xf] %v1813
      %s1838 = smul.u32 12, %s19
      %p1839 = scmp.lt.s32.totalorder %s18, 1
      %s1840 = scalar_select %p1839, %s18, 1
      %p1841 = scmp.lt.s32.totalorder %s1838, 47
      %s1842 = scalar_select %p1841, %s1838, 47
      %s1843 = smul.addr %s1840, 48
      %s1844 = sadd.s32 %s1842, %s1843
      %s1845 = smul.addr %s1844, 4
      %s1846 = scalar_lea.vmem %s3, %s1845
      // Predicated region
      $region111: #{conv_block_odconv_forward.2} parent=27 // pred_check
        %p1847 = pneg %p93
      $region112: #{conv_block_odconv_forward.2} parent=27 // pred_check_branch
        %1849 = sbr.rel (%p1847) target = $region114
      $region113: #{conv_block_odconv_forward.2} parent=27 // pred_region
        %s1850 = smul.u32 12, %s19
      $region114: #{conv_block_odconv_forward.2} parent=27 // pred_fallthru
        _
    $region28: #{conv_block_odconv_forward.2} parent=5 // pred_fallthru
      _
    %p1851 = scmp.le.s32.totalorder 2, %s9
    // Predicated region
    $region115: #{conv_block_odconv_forward.2} parent=5 // pred_check
      %p1852 = pneg %p1851
    $region116: #{conv_block_odconv_forward.2} parent=5 // pred_check_branch
      %1854 = sbr.rel (%p1852) target = $region118
    $region117: #{conv_block_odconv_forward.2} parent=5 // pred_region
      %s1855 = ssub.s32 %s9, 2
      // Predicated region
      $region119: #{conv_block_odconv_forward.2} parent=117 // pred_check
        %p1856 = pneg %p99
      $region120: #{conv_block_odconv_forward.2} parent=117 // pred_check_branch
        %1858 = sbr.rel (%p1856) target = $region122
      $region121: #{conv_block_odconv_forward.2} parent=117 // pred_region
        %s1859 = smul.u32 12, %s21
        %p1860 = scmp.lt.s32.totalorder %s20, 1
        %s1861 = scalar_select %p1860, %s20, 1
        %p1862 = scmp.lt.s32.totalorder %s1859, 47
        %s1863 = scalar_select %p1862, %s1859, 47
        %s1864 = smul.addr %s1861, 48
        %s1865 = sadd.s32 %s1863, %s1864
        %s1866 = smul.addr %s1865, 4
        %s1867 = scalar_lea.vmem %s3, %s1866
      $region122: #{conv_block_odconv_forward.2} parent=117 // pred_fallthru
        _
    $region118: #{conv_block_odconv_forward.2} parent=5 // pred_fallthru
      _
  $region6: #{conv_block_odconv_forward.2} parent=0 // loop_footer
    %s13 = sadd.s32 1, %s9
  $region7: #{conv_block_odconv_forward.2} parent=0 // loop_footer_branch
    %8 = sbr.rel target = $region3
  $region8: #{conv_block_odconv_forward.2} parent=0 // loop_exit
    _
  %1868 = vsyncmov [#allocation3]
  %s1869 = vpop.sfrf %1868
  %p1870 = scmp.eq.s32.totalorder %s1869, 0
  %p1871 = pneg %p1870
  %1873 = shalt.err (%p1871)
  %s1874 = scalar_lea.sflag [#allocation3], 1
  %1875 = vsyncmov %s1874
  %s1876 = vpop.sfrf %1875
  %p1877 = scmp.eq.s32.totalorder %s1876, 0
  %p1878 = pneg %p1877
  %1880 = shalt.err (%p1878)

</llo_original>
